<compile_context>
chip_gen: v7x
topology: tpu7x:2x2x1
jax: 0.10.0
libtpu: 0.0.40
codegen_flags: <defaults>
</compile_context>

<pallas_src>
import functools

import jax
import jax.numpy as jnp
from jax import lax
from jax.experimental import pallas as pl
from jax.experimental.pallas import tpu as pltpu


# ---------------------------------------------------------------------------
# One fused kernel for the whole num_layers stack.
# ---------------------------------------------------------------------------
def _lstm_stack_kernel(x_ref, wih_ref, whh_ref, b_ref, o_ref, gx_ref, *, T, N, V, L):
    """Fully fused multi-layer LSTM forward; everything resident in VMEM.

    x_ref  : (T*N, V)   time-major input rows (row = t*N + n)
    wih_ref: (L, V, 4V) W_ih^T per layer
    whh_ref: (L, V, 4V) W_hh^T per layer
    b_ref  : (L, 1, 4V) b_ih + b_hh per layer
    o_ref  : (T*N, V)   output rows; also serves as the inter-layer ping buffer
    gx_ref : (T*N, 4V)  VMEM scratch: hoisted input projection of the current layer
    """
    src = x_ref  # layer 0 reads the input; later layers read the previous layer's output

    for layer in range(L):  # static unroll over layers; weights indexed statically
        # ---- hoisted non-recurrent projection for the whole sequence (one MXU matmul)
        gx_ref[...] = (
            jnp.dot(src[...], wih_ref[layer], preferred_element_type=jnp.float32)
            + b_ref[layer]
        )

        whh = whh_ref[layer]  # (V, 4V): stays resident across all time steps

        # ---- sequential recurrence, fully unrolled in one program --------------------
        def step(t, carry, whh=whh):
            h, c = carry
            rows = pl.ds(t * N, N)  # time-major rows of step t

            # (N, 4V): 4V = 128 lanes -> lane-dense VPU/MXU/EUP work.
            gates = gx_ref[rows, :] + jnp.dot(
                h, whh, preferred_element_type=jnp.float32
            )

            # Two full-vreg EUP passes, then per-gate slices (PyTorch order: i, f, g, o).
            sg = jax.nn.sigmoid(gates)
            tg = jnp.tanh(gates)
            i = sg[:, 0 * V:1 * V]
            f = sg[:, 1 * V:2 * V]
            g = tg[:, 2 * V:3 * V]
            o = sg[:, 3 * V:4 * V]

            c_new = f * c + i * g
            h_new = o * jnp.tanh(c_new)

            # Write into the VMEM-resident output block; the HBM writeback happens once
            # at the end of the (single) program. gx for this layer was already consumed
            # into gx_ref, so overwriting o_ref (next layer's input) here is safe.
            o_ref[rows, :] = h_new
            return h_new, c_new

        h0 = jnp.zeros((N, V), jnp.float32)
        c0 = jnp.zeros((N, V), jnp.float32)
        lax.fori_loop(0, T, step, (h0, c0), unroll=True)

        src = o_ref  # next layer consumes this layer's output


# ---------------------------------------------------------------------------
# Full module: stacked layers, batch_first interface like nn.LSTM.
# ---------------------------------------------------------------------------
def lstm_forward(x_ntd, params):
    """x_ntd: (N, T, V) batch-first. params: [(W_ih, W_hh, b_ih, b_hh)] per layer.
    Returns the last layer's output sequence, (N, T, V) — matches LSTMCell.forward."""
    N, T, V = x_ntd.shape
    L = len(params)

    wih = jnp.stack(
        [jnp.transpose(p[0]).astype(jnp.float32) for p in params]
    )  # (L, V, 4V)
    whh = jnp.stack(
        [jnp.transpose(p[1]).astype(jnp.float32) for p in params]
    )  # (L, V, 4V)
    bias = jnp.stack(
        [(p[2] + p[3]).astype(jnp.float32).reshape(1, 4 * V) for p in params]
    )  # (L, 1, 4V)

    # Single layout conversion for the whole stack: batch-first -> time-major rows.
    # (The reshape after the transpose is a free metadata op.)
    x_rows = jnp.transpose(x_ntd.astype(jnp.float32), (1, 0, 2)).reshape(T * N, V)

    kernel = functools.partial(_lstm_stack_kernel, T=T, N=N, V=V, L=L)

    out_rows = pl.pallas_call(
        kernel,
        out_shape=jax.ShapeDtypeStruct((T * N, V), jnp.float32),
        grid_spec=pltpu.PrefetchScalarGridSpec(
            num_scalar_prefetch=0,
            grid=(1,),  # single program: everything fits VMEM at these sizes
            in_specs=[
                pl.BlockSpec((T * N, V), lambda i: (0, 0)),
                pl.BlockSpec((L, V, 4 * V), lambda i: (0, 0, 0)),
                pl.BlockSpec((L, V, 4 * V), lambda i: (0, 0, 0)),
                pl.BlockSpec((L, 1, 4 * V), lambda i: (0, 0, 0)),
            ],
            out_specs=pl.BlockSpec((T * N, V), lambda i: (0, 0)),
            scratch_shapes=[pltpu.VMEM((T * N, 4 * V), jnp.float32)],
        ),
        compiler_params=pltpu.CompilerParams(
            dimension_semantics=("arbitrary",)  # sequential recurrence inside
        ),
    )(x_rows, wih, whh, bias)

    return jnp.transpose(out_rows.reshape(T, N, V), (1, 0, 2))


# ---------------------------------------------------------------------------
# Pure-JAX reference (same math as torch.nn.LSTM forward, zero initial states).
# ---------------------------------------------------------------------------
def lstm_ref(x_ntd, params):
    x = x_ntd.astype(jnp.float32)
    for (w_ih, w_hh, b_ih, b_hh) in params:
        N, T, _ = x.shape
        H = w_hh.shape[1]
        h = jnp.zeros((N, H), jnp.float32)
        c = jnp.zeros((N, H), jnp.float32)
        outs = []
        for t in range(T):
            gates = (x[:, t, :] @ w_ih.T + b_ih) + (h @ w_hh.T + b_hh)
            i = jax.nn.sigmoid(gates[:, 0 * H:1 * H])
            f = jax.nn.sigmoid(gates[:, 1 * H:2 * H])
            g = jnp.tanh(gates[:, 2 * H:3 * H])
            o = jax.nn.sigmoid(gates[:, 3 * H:4 * H])
            c = f * c + i * g
            h = o * jnp.tanh(c)
            outs.append(h)
        x = jnp.stack(outs, axis=1)
    return x


if __name__ == "__main__":
    N, T, V, L = 2, 8, 32, 2  # batch, seq, vector_size (= hidden), num_layers

    key = jax.random.PRNGKey(0)
    kx, kp = jax.random.split(key)
    x = jax.random.normal(kx, (N, T, V), jnp.float32)

    # Deterministic parameters (PyTorch-style uniform(-1/sqrt(H), 1/sqrt(H))).
    s = 1.0 / (V ** 0.5)
    params = []
    for _ in range(L):
        kp, k1, k2, k3, k4 = jax.random.split(kp, 5)
        params.append((
            jax.random.uniform(k1, (4 * V, V), jnp.float32, -s, s),  # W_ih
            jax.random.uniform(k2, (4 * V, V), jnp.float32, -s, s),  # W_hh
            jax.random.uniform(k3, (4 * V,), jnp.float32, -s, s),    # b_ih
            jax.random.uniform(k4, (4 * V,), jnp.float32, -s, s),    # b_hh
        ))

    fwd = jax.jit(lstm_forward)
    out = jax.block_until_ready(fwd(x, params))
    assert out.shape == (N, T, V)

    # Reference computed at full f32 matmul precision.
    with jax.default_matmul_precision("float32"):
        ref = jax.block_until_ready(lstm_ref(x, params))

    max_err = float(jnp.max(jnp.abs(out - ref)))
    # Tolerance: tight enough to catch any real bug (wrong gate order/bias/time shift
    # errs at ~1e-1), loose enough to absorb MXU f32-via-bf16-pass rounding, which can
    # reach a few 1e-3 absolute over 2 layers x 8 steps.
    assert max_err < 5e-3, max_err
    print("KERNEL_OK")
</pallas_src>

<mosaic_0001>
module attributes {stable_mosaic.version = 11 : i64} {
  func.func @_lstm_stack_kernel(%arg0: i32, %arg1: memref<16x32xf32, #tpu.memory_space<vmem>>, %arg2: memref<2x32x128xf32, #tpu.memory_space<vmem>>, %arg3: memref<2x32x128xf32, #tpu.memory_space<vmem>>, %arg4: memref<2x1x128xf32, #tpu.memory_space<vmem>>, %arg5: memref<16x32xf32, #tpu.memory_space<vmem>>, %arg6: memref<16x128xf32, #tpu.memory_space<vmem>>) attributes {dimension_semantics = [#tpu.dimension_semantics<arbitrary>], iteration_bounds = array<i64: 1>, scalar_prefetch = 0 : i64, scratch_operands = 1 : i64, tpu.core_type = #tpu.core_type<tc>, window_params = [{pipeline_mode = #tpu.pipeline_mode<synchronous>, transform_indices = @transform_0, window_bounds = array<i64: 16, 32>}, {pipeline_mode = #tpu.pipeline_mode<synchronous>, transform_indices = @transform_1, window_bounds = array<i64: 2, 32, 128>}, {pipeline_mode = #tpu.pipeline_mode<synchronous>, transform_indices = @transform_2, window_bounds = array<i64: 2, 32, 128>}, {pipeline_mode = #tpu.pipeline_mode<synchronous>, transform_indices = @transform_3, window_bounds = array<i64: 2, 1, 128>}, {pipeline_mode = #tpu.pipeline_mode<synchronous>, transform_indices = @transform_4, window_bounds = array<i64: 16, 32>}]} {
    %c0 = arith.constant 0 : index
    %c0_0 = arith.constant 0 : index
    %0 = vector.load %arg1[%c0, %c0_0] : memref<16x32xf32, #tpu.memory_space<vmem>>, vector<16x32xf32>
    %c0_1 = arith.constant 0 : index
    %c0_2 = arith.constant 0 : index
    %c0_3 = arith.constant 0 : index
    %1 = vector.load %arg2[%c0_1, %c0_2, %c0_3] : memref<2x32x128xf32, #tpu.memory_space<vmem>>, vector<1x32x128xf32>
    %2 = vector.shape_cast %1 : vector<1x32x128xf32> to vector<32x128xf32>
    %cst = arith.constant dense<0.000000e+00> : vector<16x128xf32>
    %3 = tpu.matmul %0, %2, %cst {dimension_numbers = #tpu.dot_dimension_numbers<[1], [0], [0], [1], [0, 0, 1, 1], [], []>} : vector<16x32xf32>, vector<32x128xf32>, vector<16x128xf32> -> vector<16x128xf32>
    %c0_4 = arith.constant 0 : index
    %c0_5 = arith.constant 0 : index
    %c0_6 = arith.constant 0 : index
    %4 = vector.load %arg4[%c0_4, %c0_5, %c0_6] : memref<2x1x128xf32, #tpu.memory_space<vmem>>, vector<1x1x128xf32>
    %5 = vector.shape_cast %4 : vector<1x1x128xf32> to vector<1x128xf32>
    %6 = vector.broadcast %5 : vector<1x128xf32> to vector<16x128xf32>
    %7 = arith.addf %3, %6 : vector<16x128xf32>
    %c0_7 = arith.constant 0 : index
    %c0_8 = arith.constant 0 : index
    %8 = vector.load %arg6[%c0_7, %c0_8] : memref<16x128xf32, #tpu.memory_space<vmem>>, vector<16x128xf32>
    tpu.vector_store %arg6[%c0_7, %c0_8], %7 {strides = array<i32>} : memref<16x128xf32, #tpu.memory_space<vmem>>, vector<16x128xf32>,
    %c0_9 = arith.constant 0 : index
    %c0_10 = arith.constant 0 : index
    %c0_11 = arith.constant 0 : index
    %9 = vector.load %arg3[%c0_9, %c0_10, %c0_11] : memref<2x32x128xf32, #tpu.memory_space<vmem>>, vector<1x32x128xf32>
    %10 = vector.shape_cast %9 : vector<1x32x128xf32> to vector<32x128xf32>
    %cst_12 = arith.constant 0.000000e+00 : f32
    %11 = vector.broadcast %cst_12 : f32 to vector<2x32xf32>
    %cst_13 = arith.constant 0.000000e+00 : f32
    %12 = vector.broadcast %cst_13 : f32 to vector<2x32xf32>
    %c0_i32 = arith.constant 0 : i32
    %c2_i32 = arith.constant 2 : i32
    %13 = arith.muli %c0_i32, %c2_i32 : i32
    %14 = arith.index_cast %13 : i32 to index
    %c0_14 = arith.constant 0 : index
    %15 = vector.load %arg6[%14, %c0_14] : memref<16x128xf32, #tpu.memory_space<vmem>>, vector<2x128xf32>
    %cst_15 = arith.constant dense<0.000000e+00> : vector<2x128xf32>
    %16 = tpu.matmul %11, %10, %cst_15 {dimension_numbers = #tpu.dot_dimension_numbers<[1], [0], [0], [1], [0, 0, 1, 1], [], []>} : vector<2x32xf32>, vector<32x128xf32>, vector<2x128xf32> -> vector<2x128xf32>
    %17 = arith.addf %15, %16 : vector<2x128xf32>
    %18 = arith.negf %17 : vector<2x128xf32>
    %19 = math.exp %18 : vector<2x128xf32>
    %cst_16 = arith.constant 1.000000e+00 : f32
    %20 = vector.broadcast %cst_16 : f32 to vector<2x128xf32>
    %21 = arith.addf %20, %19 : vector<2x128xf32>
    %22 = arith.divf %20, %21 : vector<2x128xf32>
    %23 = math.tanh %17 : vector<2x128xf32>
    %24 = vector.extract_strided_slice %22 {offsets = [0, 0], sizes = [2, 32], strides = [1, 1]} : vector<2x128xf32> to vector<2x32xf32>
    %25 = vector.extract_strided_slice %22 {offsets = [0, 32], sizes = [2, 32], strides = [1, 1]} : vector<2x128xf32> to vector<2x32xf32>
    %26 = vector.extract_strided_slice %23 {offsets = [0, 64], sizes = [2, 32], strides = [1, 1]} : vector<2x128xf32> to vector<2x32xf32>
    %27 = vector.extract_strided_slice %22 {offsets = [0, 96], sizes = [2, 32], strides = [1, 1]} : vector<2x128xf32> to vector<2x32xf32>
    %28 = arith.mulf %25, %12 : vector<2x32xf32>
    %29 = arith.mulf %24, %26 : vector<2x32xf32>
    %30 = arith.addf %28, %29 : vector<2x32xf32>
    %31 = math.tanh %30 : vector<2x32xf32>
    %32 = arith.mulf %27, %31 : vector<2x32xf32>
    %33 = arith.index_cast %13 : i32 to index
    %c0_17 = arith.constant 0 : index
    %34 = vector.load %arg5[%33, %c0_17] : memref<16x32xf32, #tpu.memory_space<vmem>>, vector<2x32xf32>
    tpu.vector_store %arg5[%33, %c0_17], %32 {strides = array<i32>} : memref<16x32xf32, #tpu.memory_space<vmem>>, vector<2x32xf32>,
    %c1_i32 = arith.constant 1 : i32
    %c2_i32_18 = arith.constant 2 : i32
    %35 = arith.muli %c1_i32, %c2_i32_18 : i32
    %36 = arith.index_cast %35 : i32 to index
    %c0_19 = arith.constant 0 : index
    %37 = vector.load %arg6[%36, %c0_19] : memref<16x128xf32, #tpu.memory_space<vmem>>, vector<2x128xf32>
    %cst_20 = arith.constant dense<0.000000e+00> : vector<2x128xf32>
    %38 = tpu.matmul %32, %10, %cst_20 {dimension_numbers = #tpu.dot_dimension_numbers<[1], [0], [0], [1], [0, 0, 1, 1], [], []>} : vector<2x32xf32>, vector<32x128xf32>, vector<2x128xf32> -> vector<2x128xf32>
    %39 = arith.addf %37, %38 : vector<2x128xf32>
    %40 = arith.negf %39 : vector<2x128xf32>
    %41 = math.exp %40 : vector<2x128xf32>
    %cst_21 = arith.constant 1.000000e+00 : f32
    %42 = vector.broadcast %cst_21 : f32 to vector<2x128xf32>
    %43 = arith.addf %42, %41 : vector<2x128xf32>
    %44 = arith.divf %42, %43 : vector<2x128xf32>
    %45 = math.tanh %39 : vector<2x128xf32>
    %46 = vector.extract_strided_slice %44 {offsets = [0, 0], sizes = [2, 32], strides = [1, 1]} : vector<2x128xf32> to vector<2x32xf32>
    %47 = vector.extract_strided_slice %44 {offsets = [0, 32], sizes = [2, 32], strides = [1, 1]} : vector<2x128xf32> to vector<2x32xf32>
    %48 = vector.extract_strided_slice %45 {offsets = [0, 64], sizes = [2, 32], strides = [1, 1]} : vector<2x128xf32> to vector<2x32xf32>
    %49 = vector.extract_strided_slice %44 {offsets = [0, 96], sizes = [2, 32], strides = [1, 1]} : vector<2x128xf32> to vector<2x32xf32>
    %50 = arith.mulf %47, %30 : vector<2x32xf32>
    %51 = arith.mulf %46, %48 : vector<2x32xf32>
    %52 = arith.addf %50, %51 : vector<2x32xf32>
    %53 = math.tanh %52 : vector<2x32xf32>
    %54 = arith.mulf %49, %53 : vector<2x32xf32>
    %55 = arith.index_cast %35 : i32 to index
    %c0_22 = arith.constant 0 : index
    %56 = vector.load %arg5[%55, %c0_22] : memref<16x32xf32, #tpu.memory_space<vmem>>, vector<2x32xf32>
    tpu.vector_store %arg5[%55, %c0_22], %54 {strides = array<i32>} : memref<16x32xf32, #tpu.memory_space<vmem>>, vector<2x32xf32>,
    %c2_i32_23 = arith.constant 2 : i32
    %c2_i32_24 = arith.constant 2 : i32
    %57 = arith.muli %c2_i32_23, %c2_i32_24 : i32
    %58 = arith.index_cast %57 : i32 to index
    %c0_25 = arith.constant 0 : index
    %59 = vector.load %arg6[%58, %c0_25] : memref<16x128xf32, #tpu.memory_space<vmem>>, vector<2x128xf32>
    %cst_26 = arith.constant dense<0.000000e+00> : vector<2x128xf32>
    %60 = tpu.matmul %54, %10, %cst_26 {dimension_numbers = #tpu.dot_dimension_numbers<[1], [0], [0], [1], [0, 0, 1, 1], [], []>} : vector<2x32xf32>, vector<32x128xf32>, vector<2x128xf32> -> vector<2x128xf32>
    %61 = arith.addf %59, %60 : vector<2x128xf32>
    %62 = arith.negf %61 : vector<2x128xf32>
    %63 = math.exp %62 : vector<2x128xf32>
    %cst_27 = arith.constant 1.000000e+00 : f32
    %64 = vector.broadcast %cst_27 : f32 to vector<2x128xf32>
    %65 = arith.addf %64, %63 : vector<2x128xf32>
    %66 = arith.divf %64, %65 : vector<2x128xf32>
    %67 = math.tanh %61 : vector<2x128xf32>
    %68 = vector.extract_strided_slice %66 {offsets = [0, 0], sizes = [2, 32], strides = [1, 1]} : vector<2x128xf32> to vector<2x32xf32>
    %69 = vector.extract_strided_slice %66 {offsets = [0, 32], sizes = [2, 32], strides = [1, 1]} : vector<2x128xf32> to vector<2x32xf32>
    %70 = vector.extract_strided_slice %67 {offsets = [0, 64], sizes = [2, 32], strides = [1, 1]} : vector<2x128xf32> to vector<2x32xf32>
    %71 = vector.extract_strided_slice %66 {offsets = [0, 96], sizes = [2, 32], strides = [1, 1]} : vector<2x128xf32> to vector<2x32xf32>
    %72 = arith.mulf %69, %52 : vector<2x32xf32>
    %73 = arith.mulf %68, %70 : vector<2x32xf32>
    %74 = arith.addf %72, %73 : vector<2x32xf32>
    %75 = math.tanh %74 : vector<2x32xf32>
    %76 = arith.mulf %71, %75 : vector<2x32xf32>
    %77 = arith.index_cast %57 : i32 to index
    %c0_28 = arith.constant 0 : index
    %78 = vector.load %arg5[%77, %c0_28] : memref<16x32xf32, #tpu.memory_space<vmem>>, vector<2x32xf32>
    tpu.vector_store %arg5[%77, %c0_28], %76 {strides = array<i32>} : memref<16x32xf32, #tpu.memory_space<vmem>>, vector<2x32xf32>,
    %c3_i32 = arith.constant 3 : i32
    %c2_i32_29 = arith.constant 2 : i32
    %79 = arith.muli %c3_i32, %c2_i32_29 : i32
    %80 = arith.index_cast %79 : i32 to index
    %c0_30 = arith.constant 0 : index
    %81 = vector.load %arg6[%80, %c0_30] : memref<16x128xf32, #tpu.memory_space<vmem>>, vector<2x128xf32>
    %cst_31 = arith.constant dense<0.000000e+00> : vector<2x128xf32>
    %82 = tpu.matmul %76, %10, %cst_31 {dimension_numbers = #tpu.dot_dimension_numbers<[1], [0], [0], [1], [0, 0, 1, 1], [], []>} : vector<2x32xf32>, vector<32x128xf32>, vector<2x128xf32> -> vector<2x128xf32>
    %83 = arith.addf %81, %82 : vector<2x128xf32>
    %84 = arith.negf %83 : vector<2x128xf32>
    %85 = math.exp %84 : vector<2x128xf32>
    %cst_32 = arith.constant 1.000000e+00 : f32
    %86 = vector.broadcast %cst_32 : f32 to vector<2x128xf32>
    %87 = arith.addf %86, %85 : vector<2x128xf32>
    %88 = arith.divf %86, %87 : vector<2x128xf32>
    %89 = math.tanh %83 : vector<2x128xf32>
    %90 = vector.extract_strided_slice %88 {offsets = [0, 0], sizes = [2, 32], strides = [1, 1]} : vector<2x128xf32> to vector<2x32xf32>
    %91 = vector.extract_strided_slice %88 {offsets = [0, 32], sizes = [2, 32], strides = [1, 1]} : vector<2x128xf32> to vector<2x32xf32>
    %92 = vector.extract_strided_slice %89 {offsets = [0, 64], sizes = [2, 32], strides = [1, 1]} : vector<2x128xf32> to vector<2x32xf32>
    %93 = vector.extract_strided_slice %88 {offsets = [0, 96], sizes = [2, 32], strides = [1, 1]} : vector<2x128xf32> to vector<2x32xf32>
    %94 = arith.mulf %91, %74 : vector<2x32xf32>
    %95 = arith.mulf %90, %92 : vector<2x32xf32>
    %96 = arith.addf %94, %95 : vector<2x32xf32>
    %97 = math.tanh %96 : vector<2x32xf32>
    %98 = arith.mulf %93, %97 : vector<2x32xf32>
    %99 = arith.index_cast %79 : i32 to index
    %c0_33 = arith.constant 0 : index
    %100 = vector.load %arg5[%99, %c0_33] : memref<16x32xf32, #tpu.memory_space<vmem>>, vector<2x32xf32>
    tpu.vector_store %arg5[%99, %c0_33], %98 {strides = array<i32>} : memref<16x32xf32, #tpu.memory_space<vmem>>, vector<2x32xf32>,
    %c4_i32 = arith.constant 4 : i32
    %c2_i32_34 = arith.constant 2 : i32
    %101 = arith.muli %c4_i32, %c2_i32_34 : i32
    %102 = arith.index_cast %101 : i32 to index
    %c0_35 = arith.constant 0 : index
    %103 = vector.load %arg6[%102, %c0_35] : memref<16x128xf32, #tpu.memory_space<vmem>>, vector<2x128xf32>
    %cst_36 = arith.constant dense<0.000000e+00> : vector<2x128xf32>
    %104 = tpu.matmul %98, %10, %cst_36 {dimension_numbers = #tpu.dot_dimension_numbers<[1], [0], [0], [1], [0, 0, 1, 1], [], []>} : vector<2x32xf32>, vector<32x128xf32>, vector<2x128xf32> -> vector<2x128xf32>
    %105 = arith.addf %103, %104 : vector<2x128xf32>
    %106 = arith.negf %105 : vector<2x128xf32>
    %107 = math.exp %106 : vector<2x128xf32>
    %cst_37 = arith.constant 1.000000e+00 : f32
    %108 = vector.broadcast %cst_37 : f32 to vector<2x128xf32>
    %109 = arith.addf %108, %107 : vector<2x128xf32>
    %110 = arith.divf %108, %109 : vector<2x128xf32>
    %111 = math.tanh %105 : vector<2x128xf32>
    %112 = vector.extract_strided_slice %110 {offsets = [0, 0], sizes = [2, 32], strides = [1, 1]} : vector<2x128xf32> to vector<2x32xf32>
    %113 = vector.extract_strided_slice %110 {offsets = [0, 32], sizes = [2, 32], strides = [1, 1]} : vector<2x128xf32> to vector<2x32xf32>
    %114 = vector.extract_strided_slice %111 {offsets = [0, 64], sizes = [2, 32], strides = [1, 1]} : vector<2x128xf32> to vector<2x32xf32>
    %115 = vector.extract_strided_slice %110 {offsets = [0, 96], sizes = [2, 32], strides = [1, 1]} : vector<2x128xf32> to vector<2x32xf32>
    %116 = arith.mulf %113, %96 : vector<2x32xf32>
    %117 = arith.mulf %112, %114 : vector<2x32xf32>
    %118 = arith.addf %116, %117 : vector<2x32xf32>
    %119 = math.tanh %118 : vector<2x32xf32>
    %120 = arith.mulf %115, %119 : vector<2x32xf32>
    %121 = arith.index_cast %101 : i32 to index
    %c0_38 = arith.constant 0 : index
    %122 = vector.load %arg5[%121, %c0_38] : memref<16x32xf32, #tpu.memory_space<vmem>>, vector<2x32xf32>
    tpu.vector_store %arg5[%121, %c0_38], %120 {strides = array<i32>} : memref<16x32xf32, #tpu.memory_space<vmem>>, vector<2x32xf32>,
    %c5_i32 = arith.constant 5 : i32
    %c2_i32_39 = arith.constant 2 : i32
    %123 = arith.muli %c5_i32, %c2_i32_39 : i32
    %124 = arith.index_cast %123 : i32 to index
    %c0_40 = arith.constant 0 : index
    %125 = vector.load %arg6[%124, %c0_40] : memref<16x128xf32, #tpu.memory_space<vmem>>, vector<2x128xf32>
    %cst_41 = arith.constant dense<0.000000e+00> : vector<2x128xf32>
    %126 = tpu.matmul %120, %10, %cst_41 {dimension_numbers = #tpu.dot_dimension_numbers<[1], [0], [0], [1], [0, 0, 1, 1], [], []>} : vector<2x32xf32>, vector<32x128xf32>, vector<2x128xf32> -> vector<2x128xf32>
    %127 = arith.addf %125, %126 : vector<2x128xf32>
    %128 = arith.negf %127 : vector<2x128xf32>
    %129 = math.exp %128 : vector<2x128xf32>
    %cst_42 = arith.constant 1.000000e+00 : f32
    %130 = vector.broadcast %cst_42 : f32 to vector<2x128xf32>
    %131 = arith.addf %130, %129 : vector<2x128xf32>
    %132 = arith.divf %130, %131 : vector<2x128xf32>
    %133 = math.tanh %127 : vector<2x128xf32>
    %134 = vector.extract_strided_slice %132 {offsets = [0, 0], sizes = [2, 32], strides = [1, 1]} : vector<2x128xf32> to vector<2x32xf32>
    %135 = vector.extract_strided_slice %132 {offsets = [0, 32], sizes = [2, 32], strides = [1, 1]} : vector<2x128xf32> to vector<2x32xf32>
    %136 = vector.extract_strided_slice %133 {offsets = [0, 64], sizes = [2, 32], strides = [1, 1]} : vector<2x128xf32> to vector<2x32xf32>
    %137 = vector.extract_strided_slice %132 {offsets = [0, 96], sizes = [2, 32], strides = [1, 1]} : vector<2x128xf32> to vector<2x32xf32>
    %138 = arith.mulf %135, %118 : vector<2x32xf32>
    %139 = arith.mulf %134, %136 : vector<2x32xf32>
    %140 = arith.addf %138, %139 : vector<2x32xf32>
    %141 = math.tanh %140 : vector<2x32xf32>
    %142 = arith.mulf %137, %141 : vector<2x32xf32>
    %143 = arith.index_cast %123 : i32 to index
    %c0_43 = arith.constant 0 : index
    %144 = vector.load %arg5[%143, %c0_43] : memref<16x32xf32, #tpu.memory_space<vmem>>, vector<2x32xf32>
    tpu.vector_store %arg5[%143, %c0_43], %142 {strides = array<i32>} : memref<16x32xf32, #tpu.memory_space<vmem>>, vector<2x32xf32>,
    %c6_i32 = arith.constant 6 : i32
    %c2_i32_44 = arith.constant 2 : i32
    %145 = arith.muli %c6_i32, %c2_i32_44 : i32
    %146 = arith.index_cast %145 : i32 to index
    %c0_45 = arith.constant 0 : index
    %147 = vector.load %arg6[%146, %c0_45] : memref<16x128xf32, #tpu.memory_space<vmem>>, vector<2x128xf32>
    %cst_46 = arith.constant dense<0.000000e+00> : vector<2x128xf32>
    %148 = tpu.matmul %142, %10, %cst_46 {dimension_numbers = #tpu.dot_dimension_numbers<[1], [0], [0], [1], [0, 0, 1, 1], [], []>} : vector<2x32xf32>, vector<32x128xf32>, vector<2x128xf32> -> vector<2x128xf32>
    %149 = arith.addf %147, %148 : vector<2x128xf32>
    %150 = arith.negf %149 : vector<2x128xf32>
    %151 = math.exp %150 : vector<2x128xf32>
    %cst_47 = arith.constant 1.000000e+00 : f32
    %152 = vector.broadcast %cst_47 : f32 to vector<2x128xf32>
    %153 = arith.addf %152, %151 : vector<2x128xf32>
    %154 = arith.divf %152, %153 : vector<2x128xf32>
    %155 = math.tanh %149 : vector<2x128xf32>
    %156 = vector.extract_strided_slice %154 {offsets = [0, 0], sizes = [2, 32], strides = [1, 1]} : vector<2x128xf32> to vector<2x32xf32>
    %157 = vector.extract_strided_slice %154 {offsets = [0, 32], sizes = [2, 32], strides = [1, 1]} : vector<2x128xf32> to vector<2x32xf32>
    %158 = vector.extract_strided_slice %155 {offsets = [0, 64], sizes = [2, 32], strides = [1, 1]} : vector<2x128xf32> to vector<2x32xf32>
    %159 = vector.extract_strided_slice %154 {offsets = [0, 96], sizes = [2, 32], strides = [1, 1]} : vector<2x128xf32> to vector<2x32xf32>
    %160 = arith.mulf %157, %140 : vector<2x32xf32>
    %161 = arith.mulf %156, %158 : vector<2x32xf32>
    %162 = arith.addf %160, %161 : vector<2x32xf32>
    %163 = math.tanh %162 : vector<2x32xf32>
    %164 = arith.mulf %159, %163 : vector<2x32xf32>
    %165 = arith.index_cast %145 : i32 to index
    %c0_48 = arith.constant 0 : index
    %166 = vector.load %arg5[%165, %c0_48] : memref<16x32xf32, #tpu.memory_space<vmem>>, vector<2x32xf32>
    tpu.vector_store %arg5[%165, %c0_48], %164 {strides = array<i32>} : memref<16x32xf32, #tpu.memory_space<vmem>>, vector<2x32xf32>,
    %c7_i32 = arith.constant 7 : i32
    %c2_i32_49 = arith.constant 2 : i32
    %167 = arith.muli %c7_i32, %c2_i32_49 : i32
    %168 = arith.index_cast %167 : i32 to index
    %c0_50 = arith.constant 0 : index
    %169 = vector.load %arg6[%168, %c0_50] : memref<16x128xf32, #tpu.memory_space<vmem>>, vector<2x128xf32>
    %cst_51 = arith.constant dense<0.000000e+00> : vector<2x128xf32>
    %170 = tpu.matmul %164, %10, %cst_51 {dimension_numbers = #tpu.dot_dimension_numbers<[1], [0], [0], [1], [0, 0, 1, 1], [], []>} : vector<2x32xf32>, vector<32x128xf32>, vector<2x128xf32> -> vector<2x128xf32>
    %171 = arith.addf %169, %170 : vector<2x128xf32>
    %172 = arith.negf %171 : vector<2x128xf32>
    %173 = math.exp %172 : vector<2x128xf32>
    %cst_52 = arith.constant 1.000000e+00 : f32
    %174 = vector.broadcast %cst_52 : f32 to vector<2x128xf32>
    %175 = arith.addf %174, %173 : vector<2x128xf32>
    %176 = arith.divf %174, %175 : vector<2x128xf32>
    %177 = math.tanh %171 : vector<2x128xf32>
    %178 = vector.extract_strided_slice %176 {offsets = [0, 0], sizes = [2, 32], strides = [1, 1]} : vector<2x128xf32> to vector<2x32xf32>
    %179 = vector.extract_strided_slice %176 {offsets = [0, 32], sizes = [2, 32], strides = [1, 1]} : vector<2x128xf32> to vector<2x32xf32>
    %180 = vector.extract_strided_slice %177 {offsets = [0, 64], sizes = [2, 32], strides = [1, 1]} : vector<2x128xf32> to vector<2x32xf32>
    %181 = vector.extract_strided_slice %176 {offsets = [0, 96], sizes = [2, 32], strides = [1, 1]} : vector<2x128xf32> to vector<2x32xf32>
    %182 = arith.mulf %179, %162 : vector<2x32xf32>
    %183 = arith.mulf %178, %180 : vector<2x32xf32>
    %184 = arith.addf %182, %183 : vector<2x32xf32>
    %185 = math.tanh %184 : vector<2x32xf32>
    %186 = arith.mulf %181, %185 : vector<2x32xf32>
    %187 = arith.index_cast %167 : i32 to index
    %c0_53 = arith.constant 0 : index
    %188 = vector.load %arg5[%187, %c0_53] : memref<16x32xf32, #tpu.memory_space<vmem>>, vector<2x32xf32>
    tpu.vector_store %arg5[%187, %c0_53], %186 {strides = array<i32>} : memref<16x32xf32, #tpu.memory_space<vmem>>, vector<2x32xf32>,
    %c8_i32 = arith.constant 8 : i32
    %c0_54 = arith.constant 0 : index
    %c0_55 = arith.constant 0 : index
    %189 = vector.load %arg5[%c0_54, %c0_55] : memref<16x32xf32, #tpu.memory_space<vmem>>, vector<16x32xf32>
    %c1 = arith.constant 1 : index
    %c0_56 = arith.constant 0 : index
    %c0_57 = arith.constant 0 : index
    %190 = vector.load %arg2[%c1, %c0_56, %c0_57] : memref<2x32x128xf32, #tpu.memory_space<vmem>>, vector<1x32x128xf32>
    %191 = vector.shape_cast %190 : vector<1x32x128xf32> to vector<32x128xf32>
    %cst_58 = arith.constant dense<0.000000e+00> : vector<16x128xf32>
    %192 = tpu.matmul %189, %191, %cst_58 {dimension_numbers = #tpu.dot_dimension_numbers<[1], [0], [0], [1], [0, 0, 1, 1], [], []>} : vector<16x32xf32>, vector<32x128xf32>, vector<16x128xf32> -> vector<16x128xf32>
    %c1_59 = arith.constant 1 : index
    %c0_60 = arith.constant 0 : index
    %c0_61 = arith.constant 0 : index
    %193 = vector.load %arg4[%c1_59, %c0_60, %c0_61] : memref<2x1x128xf32, #tpu.memory_space<vmem>>, vector<1x1x128xf32>
    %194 = vector.shape_cast %193 : vector<1x1x128xf32> to vector<1x128xf32>
    %195 = vector.broadcast %194 : vector<1x128xf32> to vector<16x128xf32>
    %196 = arith.addf %192, %195 : vector<16x128xf32>
    %c0_62 = arith.constant 0 : index
    %c0_63 = arith.constant 0 : index
    %197 = vector.load %arg6[%c0_62, %c0_63] : memref<16x128xf32, #tpu.memory_space<vmem>>, vector<16x128xf32>
    tpu.vector_store %arg6[%c0_62, %c0_63], %196 {strides = array<i32>} : memref<16x128xf32, #tpu.memory_space<vmem>>, vector<16x128xf32>,
    %c1_64 = arith.constant 1 : index
    %c0_65 = arith.constant 0 : index
    %c0_66 = arith.constant 0 : index
    %198 = vector.load %arg3[%c1_64, %c0_65, %c0_66] : memref<2x32x128xf32, #tpu.memory_space<vmem>>, vector<1x32x128xf32>
    %199 = vector.shape_cast %198 : vector<1x32x128xf32> to vector<32x128xf32>
    %cst_67 = arith.constant 0.000000e+00 : f32
    %200 = vector.broadcast %cst_67 : f32 to vector<2x32xf32>
    %cst_68 = arith.constant 0.000000e+00 : f32
    %201 = vector.broadcast %cst_68 : f32 to vector<2x32xf32>
    %c0_i32_69 = arith.constant 0 : i32
    %c2_i32_70 = arith.constant 2 : i32
    %202 = arith.muli %c0_i32_69, %c2_i32_70 : i32
    %203 = arith.index_cast %202 : i32 to index
    %c0_71 = arith.constant 0 : index
    %204 = vector.load %arg6[%203, %c0_71] : memref<16x128xf32, #tpu.memory_space<vmem>>, vector<2x128xf32>
    %cst_72 = arith.constant dense<0.000000e+00> : vector<2x128xf32>
    %205 = tpu.matmul %200, %199, %cst_72 {dimension_numbers = #tpu.dot_dimension_numbers<[1], [0], [0], [1], [0, 0, 1, 1], [], []>} : vector<2x32xf32>, vector<32x128xf32>, vector<2x128xf32> -> vector<2x128xf32>
    %206 = arith.addf %204, %205 : vector<2x128xf32>
    %207 = arith.negf %206 : vector<2x128xf32>
    %208 = math.exp %207 : vector<2x128xf32>
    %cst_73 = arith.constant 1.000000e+00 : f32
    %209 = vector.broadcast %cst_73 : f32 to vector<2x128xf32>
    %210 = arith.addf %209, %208 : vector<2x128xf32>
    %211 = arith.divf %209, %210 : vector<2x128xf32>
    %212 = math.tanh %206 : vector<2x128xf32>
    %213 = vector.extract_strided_slice %211 {offsets = [0, 0], sizes = [2, 32], strides = [1, 1]} : vector<2x128xf32> to vector<2x32xf32>
    %214 = vector.extract_strided_slice %211 {offsets = [0, 32], sizes = [2, 32], strides = [1, 1]} : vector<2x128xf32> to vector<2x32xf32>
    %215 = vector.extract_strided_slice %212 {offsets = [0, 64], sizes = [2, 32], strides = [1, 1]} : vector<2x128xf32> to vector<2x32xf32>
    %216 = vector.extract_strided_slice %211 {offsets = [0, 96], sizes = [2, 32], strides = [1, 1]} : vector<2x128xf32> to vector<2x32xf32>
    %217 = arith.mulf %214, %201 : vector<2x32xf32>
    %218 = arith.mulf %213, %215 : vector<2x32xf32>
    %219 = arith.addf %217, %218 : vector<2x32xf32>
    %220 = math.tanh %219 : vector<2x32xf32>
    %221 = arith.mulf %216, %220 : vector<2x32xf32>
    %222 = arith.index_cast %202 : i32 to index
    %c0_74 = arith.constant 0 : index
    %223 = vector.load %arg5[%222, %c0_74] : memref<16x32xf32, #tpu.memory_space<vmem>>, vector<2x32xf32>
    tpu.vector_store %arg5[%222, %c0_74], %221 {strides = array<i32>} : memref<16x32xf32, #tpu.memory_space<vmem>>, vector<2x32xf32>,
    %c1_i32_75 = arith.constant 1 : i32
    %c2_i32_76 = arith.constant 2 : i32
    %224 = arith.muli %c1_i32_75, %c2_i32_76 : i32
    %225 = arith.index_cast %224 : i32 to index
    %c0_77 = arith.constant 0 : index
    %226 = vector.load %arg6[%225, %c0_77] : memref<16x128xf32, #tpu.memory_space<vmem>>, vector<2x128xf32>
    %cst_78 = arith.constant dense<0.000000e+00> : vector<2x128xf32>
    %227 = tpu.matmul %221, %199, %cst_78 {dimension_numbers = #tpu.dot_dimension_numbers<[1], [0], [0], [1], [0, 0, 1, 1], [], []>} : vector<2x32xf32>, vector<32x128xf32>, vector<2x128xf32> -> vector<2x128xf32>
    %228 = arith.addf %226, %227 : vector<2x128xf32>
    %229 = arith.negf %228 : vector<2x128xf32>
    %230 = math.exp %229 : vector<2x128xf32>
    %cst_79 = arith.constant 1.000000e+00 : f32
    %231 = vector.broadcast %cst_79 : f32 to vector<2x128xf32>
    %232 = arith.addf %231, %230 : vector<2x128xf32>
    %233 = arith.divf %231, %232 : vector<2x128xf32>
    %234 = math.tanh %228 : vector<2x128xf32>
    %235 = vector.extract_strided_slice %233 {offsets = [0, 0], sizes = [2, 32], strides = [1, 1]} : vector<2x128xf32> to vector<2x32xf32>
    %236 = vector.extract_strided_slice %233 {offsets = [0, 32], sizes = [2, 32], strides = [1, 1]} : vector<2x128xf32> to vector<2x32xf32>
    %237 = vector.extract_strided_slice %234 {offsets = [0, 64], sizes = [2, 32], strides = [1, 1]} : vector<2x128xf32> to vector<2x32xf32>
    %238 = vector.extract_strided_slice %233 {offsets = [0, 96], sizes = [2, 32], strides = [1, 1]} : vector<2x128xf32> to vector<2x32xf32>
    %239 = arith.mulf %236, %219 : vector<2x32xf32>
    %240 = arith.mulf %235, %237 : vector<2x32xf32>
    %241 = arith.addf %239, %240 : vector<2x32xf32>
    %242 = math.tanh %241 : vector<2x32xf32>
    %243 = arith.mulf %238, %242 : vector<2x32xf32>
    %244 = arith.index_cast %224 : i32 to index
    %c0_80 = arith.constant 0 : index
    %245 = vector.load %arg5[%244, %c0_80] : memref<16x32xf32, #tpu.memory_space<vmem>>, vector<2x32xf32>
    tpu.vector_store %arg5[%244, %c0_80], %243 {strides = array<i32>} : memref<16x32xf32, #tpu.memory_space<vmem>>, vector<2x32xf32>,
    %c2_i32_81 = arith.constant 2 : i32
    %c2_i32_82 = arith.constant 2 : i32
    %246 = arith.muli %c2_i32_81, %c2_i32_82 : i32
    %247 = arith.index_cast %246 : i32 to index
    %c0_83 = arith.constant 0 : index
    %248 = vector.load %arg6[%247, %c0_83] : memref<16x128xf32, #tpu.memory_space<vmem>>, vector<2x128xf32>
    %cst_84 = arith.constant dense<0.000000e+00> : vector<2x128xf32>
    %249 = tpu.matmul %243, %199, %cst_84 {dimension_numbers = #tpu.dot_dimension_numbers<[1], [0], [0], [1], [0, 0, 1, 1], [], []>} : vector<2x32xf32>, vector<32x128xf32>, vector<2x128xf32> -> vector<2x128xf32>
    %250 = arith.addf %248, %249 : vector<2x128xf32>
    %251 = arith.negf %250 : vector<2x128xf32>
    %252 = math.exp %251 : vector<2x128xf32>
    %cst_85 = arith.constant 1.000000e+00 : f32
    %253 = vector.broadcast %cst_85 : f32 to vector<2x128xf32>
    %254 = arith.addf %253, %252 : vector<2x128xf32>
    %255 = arith.divf %253, %254 : vector<2x128xf32>
    %256 = math.tanh %250 : vector<2x128xf32>
    %257 = vector.extract_strided_slice %255 {offsets = [0, 0], sizes = [2, 32], strides = [1, 1]} : vector<2x128xf32> to vector<2x32xf32>
    %258 = vector.extract_strided_slice %255 {offsets = [0, 32], sizes = [2, 32], strides = [1, 1]} : vector<2x128xf32> to vector<2x32xf32>
    %259 = vector.extract_strided_slice %256 {offsets = [0, 64], sizes = [2, 32], strides = [1, 1]} : vector<2x128xf32> to vector<2x32xf32>
    %260 = vector.extract_strided_slice %255 {offsets = [0, 96], sizes = [2, 32], strides = [1, 1]} : vector<2x128xf32> to vector<2x32xf32>
    %261 = arith.mulf %258, %241 : vector<2x32xf32>
    %262 = arith.mulf %257, %259 : vector<2x32xf32>
    %263 = arith.addf %261, %262 : vector<2x32xf32>
    %264 = math.tanh %263 : vector<2x32xf32>
    %265 = arith.mulf %260, %264 : vector<2x32xf32>
    %266 = arith.index_cast %246 : i32 to index
    %c0_86 = arith.constant 0 : index
    %267 = vector.load %arg5[%266, %c0_86] : memref<16x32xf32, #tpu.memory_space<vmem>>, vector<2x32xf32>
    tpu.vector_store %arg5[%266, %c0_86], %265 {strides = array<i32>} : memref<16x32xf32, #tpu.memory_space<vmem>>, vector<2x32xf32>,
    %c3_i32_87 = arith.constant 3 : i32
    %c2_i32_88 = arith.constant 2 : i32
    %268 = arith.muli %c3_i32_87, %c2_i32_88 : i32
    %269 = arith.index_cast %268 : i32 to index
    %c0_89 = arith.constant 0 : index
    %270 = vector.load %arg6[%269, %c0_89] : memref<16x128xf32, #tpu.memory_space<vmem>>, vector<2x128xf32>
    %cst_90 = arith.constant dense<0.000000e+00> : vector<2x128xf32>
    %271 = tpu.matmul %265, %199, %cst_90 {dimension_numbers = #tpu.dot_dimension_numbers<[1], [0], [0], [1], [0, 0, 1, 1], [], []>} : vector<2x32xf32>, vector<32x128xf32>, vector<2x128xf32> -> vector<2x128xf32>
    %272 = arith.addf %270, %271 : vector<2x128xf32>
    %273 = arith.negf %272 : vector<2x128xf32>
    %274 = math.exp %273 : vector<2x128xf32>
    %cst_91 = arith.constant 1.000000e+00 : f32
    %275 = vector.broadcast %cst_91 : f32 to vector<2x128xf32>
    %276 = arith.addf %275, %274 : vector<2x128xf32>
    %277 = arith.divf %275, %276 : vector<2x128xf32>
    %278 = math.tanh %272 : vector<2x128xf32>
    %279 = vector.extract_strided_slice %277 {offsets = [0, 0], sizes = [2, 32], strides = [1, 1]} : vector<2x128xf32> to vector<2x32xf32>
    %280 = vector.extract_strided_slice %277 {offsets = [0, 32], sizes = [2, 32], strides = [1, 1]} : vector<2x128xf32> to vector<2x32xf32>
    %281 = vector.extract_strided_slice %278 {offsets = [0, 64], sizes = [2, 32], strides = [1, 1]} : vector<2x128xf32> to vector<2x32xf32>
    %282 = vector.extract_strided_slice %277 {offsets = [0, 96], sizes = [2, 32], strides = [1, 1]} : vector<2x128xf32> to vector<2x32xf32>
    %283 = arith.mulf %280, %263 : vector<2x32xf32>
    %284 = arith.mulf %279, %281 : vector<2x32xf32>
    %285 = arith.addf %283, %284 : vector<2x32xf32>
    %286 = math.tanh %285 : vector<2x32xf32>
    %287 = arith.mulf %282, %286 : vector<2x32xf32>
    %288 = arith.index_cast %268 : i32 to index
    %c0_92 = arith.constant 0 : index
    %289 = vector.load %arg5[%288, %c0_92] : memref<16x32xf32, #tpu.memory_space<vmem>>, vector<2x32xf32>
    tpu.vector_store %arg5[%288, %c0_92], %287 {strides = array<i32>} : memref<16x32xf32, #tpu.memory_space<vmem>>, vector<2x32xf32>,
    %c4_i32_93 = arith.constant 4 : i32
    %c2_i32_94 = arith.constant 2 : i32
    %290 = arith.muli %c4_i32_93, %c2_i32_94 : i32
    %291 = arith.index_cast %290 : i32 to index
    %c0_95 = arith.constant 0 : index
    %292 = vector.load %arg6[%291, %c0_95] : memref<16x128xf32, #tpu.memory_space<vmem>>, vector<2x128xf32>
    %cst_96 = arith.constant dense<0.000000e+00> : vector<2x128xf32>
    %293 = tpu.matmul %287, %199, %cst_96 {dimension_numbers = #tpu.dot_dimension_numbers<[1], [0], [0], [1], [0, 0, 1, 1], [], []>} : vector<2x32xf32>, vector<32x128xf32>, vector<2x128xf32> -> vector<2x128xf32>
    %294 = arith.addf %292, %293 : vector<2x128xf32>
    %295 = arith.negf %294 : vector<2x128xf32>
    %296 = math.exp %295 : vector<2x128xf32>
    %cst_97 = arith.constant 1.000000e+00 : f32
    %297 = vector.broadcast %cst_97 : f32 to vector<2x128xf32>
    %298 = arith.addf %297, %296 : vector<2x128xf32>
    %299 = arith.divf %297, %298 : vector<2x128xf32>
    %300 = math.tanh %294 : vector<2x128xf32>
    %301 = vector.extract_strided_slice %299 {offsets = [0, 0], sizes = [2, 32], strides = [1, 1]} : vector<2x128xf32> to vector<2x32xf32>
    %302 = vector.extract_strided_slice %299 {offsets = [0, 32], sizes = [2, 32], strides = [1, 1]} : vector<2x128xf32> to vector<2x32xf32>
    %303 = vector.extract_strided_slice %300 {offsets = [0, 64], sizes = [2, 32], strides = [1, 1]} : vector<2x128xf32> to vector<2x32xf32>
    %304 = vector.extract_strided_slice %299 {offsets = [0, 96], sizes = [2, 32], strides = [1, 1]} : vector<2x128xf32> to vector<2x32xf32>
    %305 = arith.mulf %302, %285 : vector<2x32xf32>
    %306 = arith.mulf %301, %303 : vector<2x32xf32>
    %307 = arith.addf %305, %306 : vector<2x32xf32>
    %308 = math.tanh %307 : vector<2x32xf32>
    %309 = arith.mulf %304, %308 : vector<2x32xf32>
    %310 = arith.index_cast %290 : i32 to index
    %c0_98 = arith.constant 0 : index
    %311 = vector.load %arg5[%310, %c0_98] : memref<16x32xf32, #tpu.memory_space<vmem>>, vector<2x32xf32>
    tpu.vector_store %arg5[%310, %c0_98], %309 {strides = array<i32>} : memref<16x32xf32, #tpu.memory_space<vmem>>, vector<2x32xf32>,
    %c5_i32_99 = arith.constant 5 : i32
    %c2_i32_100 = arith.constant 2 : i32
    %312 = arith.muli %c5_i32_99, %c2_i32_100 : i32
    %313 = arith.index_cast %312 : i32 to index
    %c0_101 = arith.constant 0 : index
    %314 = vector.load %arg6[%313, %c0_101] : memref<16x128xf32, #tpu.memory_space<vmem>>, vector<2x128xf32>
    %cst_102 = arith.constant dense<0.000000e+00> : vector<2x128xf32>
    %315 = tpu.matmul %309, %199, %cst_102 {dimension_numbers = #tpu.dot_dimension_numbers<[1], [0], [0], [1], [0, 0, 1, 1], [], []>} : vector<2x32xf32>, vector<32x128xf32>, vector<2x128xf32> -> vector<2x128xf32>
    %316 = arith.addf %314, %315 : vector<2x128xf32>
    %317 = arith.negf %316 : vector<2x128xf32>
    %318 = math.exp %317 : vector<2x128xf32>
    %cst_103 = arith.constant 1.000000e+00 : f32
    %319 = vector.broadcast %cst_103 : f32 to vector<2x128xf32>
    %320 = arith.addf %319, %318 : vector<2x128xf32>
    %321 = arith.divf %319, %320 : vector<2x128xf32>
    %322 = math.tanh %316 : vector<2x128xf32>
    %323 = vector.extract_strided_slice %321 {offsets = [0, 0], sizes = [2, 32], strides = [1, 1]} : vector<2x128xf32> to vector<2x32xf32>
    %324 = vector.extract_strided_slice %321 {offsets = [0, 32], sizes = [2, 32], strides = [1, 1]} : vector<2x128xf32> to vector<2x32xf32>
    %325 = vector.extract_strided_slice %322 {offsets = [0, 64], sizes = [2, 32], strides = [1, 1]} : vector<2x128xf32> to vector<2x32xf32>
    %326 = vector.extract_strided_slice %321 {offsets = [0, 96], sizes = [2, 32], strides = [1, 1]} : vector<2x128xf32> to vector<2x32xf32>
    %327 = arith.mulf %324, %307 : vector<2x32xf32>
    %328 = arith.mulf %323, %325 : vector<2x32xf32>
    %329 = arith.addf %327, %328 : vector<2x32xf32>
    %330 = math.tanh %329 : vector<2x32xf32>
    %331 = arith.mulf %326, %330 : vector<2x32xf32>
    %332 = arith.index_cast %312 : i32 to index
    %c0_104 = arith.constant 0 : index
    %333 = vector.load %arg5[%332, %c0_104] : memref<16x32xf32, #tpu.memory_space<vmem>>, vector<2x32xf32>
    tpu.vector_store %arg5[%332, %c0_104], %331 {strides = array<i32>} : memref<16x32xf32, #tpu.memory_space<vmem>>, vector<2x32xf32>,
    %c6_i32_105 = arith.constant 6 : i32
    %c2_i32_106 = arith.constant 2 : i32
    %334 = arith.muli %c6_i32_105, %c2_i32_106 : i32
    %335 = arith.index_cast %334 : i32 to index
    %c0_107 = arith.constant 0 : index
    %336 = vector.load %arg6[%335, %c0_107] : memref<16x128xf32, #tpu.memory_space<vmem>>, vector<2x128xf32>
    %cst_108 = arith.constant dense<0.000000e+00> : vector<2x128xf32>
    %337 = tpu.matmul %331, %199, %cst_108 {dimension_numbers = #tpu.dot_dimension_numbers<[1], [0], [0], [1], [0, 0, 1, 1], [], []>} : vector<2x32xf32>, vector<32x128xf32>, vector<2x128xf32> -> vector<2x128xf32>
    %338 = arith.addf %336, %337 : vector<2x128xf32>
    %339 = arith.negf %338 : vector<2x128xf32>
    %340 = math.exp %339 : vector<2x128xf32>
    %cst_109 = arith.constant 1.000000e+00 : f32
    %341 = vector.broadcast %cst_109 : f32 to vector<2x128xf32>
    %342 = arith.addf %341, %340 : vector<2x128xf32>
    %343 = arith.divf %341, %342 : vector<2x128xf32>
    %344 = math.tanh %338 : vector<2x128xf32>
    %345 = vector.extract_strided_slice %343 {offsets = [0, 0], sizes = [2, 32], strides = [1, 1]} : vector<2x128xf32> to vector<2x32xf32>
    %346 = vector.extract_strided_slice %343 {offsets = [0, 32], sizes = [2, 32], strides = [1, 1]} : vector<2x128xf32> to vector<2x32xf32>
    %347 = vector.extract_strided_slice %344 {offsets = [0, 64], sizes = [2, 32], strides = [1, 1]} : vector<2x128xf32> to vector<2x32xf32>
    %348 = vector.extract_strided_slice %343 {offsets = [0, 96], sizes = [2, 32], strides = [1, 1]} : vector<2x128xf32> to vector<2x32xf32>
    %349 = arith.mulf %346, %329 : vector<2x32xf32>
    %350 = arith.mulf %345, %347 : vector<2x32xf32>
    %351 = arith.addf %349, %350 : vector<2x32xf32>
    %352 = math.tanh %351 : vector<2x32xf32>
    %353 = arith.mulf %348, %352 : vector<2x32xf32>
    %354 = arith.index_cast %334 : i32 to index
    %c0_110 = arith.constant 0 : index
    %355 = vector.load %arg5[%354, %c0_110] : memref<16x32xf32, #tpu.memory_space<vmem>>, vector<2x32xf32>
    tpu.vector_store %arg5[%354, %c0_110], %353 {strides = array<i32>} : memref<16x32xf32, #tpu.memory_space<vmem>>, vector<2x32xf32>,
    %c7_i32_111 = arith.constant 7 : i32
    %c2_i32_112 = arith.constant 2 : i32
    %356 = arith.muli %c7_i32_111, %c2_i32_112 : i32
    %357 = arith.index_cast %356 : i32 to index
    %c0_113 = arith.constant 0 : index
    %358 = vector.load %arg6[%357, %c0_113] : memref<16x128xf32, #tpu.memory_space<vmem>>, vector<2x128xf32>
    %cst_114 = arith.constant dense<0.000000e+00> : vector<2x128xf32>
    %359 = tpu.matmul %353, %199, %cst_114 {dimension_numbers = #tpu.dot_dimension_numbers<[1], [0], [0], [1], [0, 0, 1, 1], [], []>} : vector<2x32xf32>, vector<32x128xf32>, vector<2x128xf32> -> vector<2x128xf32>
    %360 = arith.addf %358, %359 : vector<2x128xf32>
    %361 = arith.negf %360 : vector<2x128xf32>
    %362 = math.exp %361 : vector<2x128xf32>
    %cst_115 = arith.constant 1.000000e+00 : f32
    %363 = vector.broadcast %cst_115 : f32 to vector<2x128xf32>
    %364 = arith.addf %363, %362 : vector<2x128xf32>
    %365 = arith.divf %363, %364 : vector<2x128xf32>
    %366 = math.tanh %360 : vector<2x128xf32>
    %367 = vector.extract_strided_slice %365 {offsets = [0, 0], sizes = [2, 32], strides = [1, 1]} : vector<2x128xf32> to vector<2x32xf32>
    %368 = vector.extract_strided_slice %365 {offsets = [0, 32], sizes = [2, 32], strides = [1, 1]} : vector<2x128xf32> to vector<2x32xf32>
    %369 = vector.extract_strided_slice %366 {offsets = [0, 64], sizes = [2, 32], strides = [1, 1]} : vector<2x128xf32> to vector<2x32xf32>
    %370 = vector.extract_strided_slice %365 {offsets = [0, 96], sizes = [2, 32], strides = [1, 1]} : vector<2x128xf32> to vector<2x32xf32>
    %371 = arith.mulf %368, %351 : vector<2x32xf32>
    %372 = arith.mulf %367, %369 : vector<2x32xf32>
    %373 = arith.addf %371, %372 : vector<2x32xf32>
    %374 = math.tanh %373 : vector<2x32xf32>
    %375 = arith.mulf %370, %374 : vector<2x32xf32>
    %376 = arith.index_cast %356 : i32 to index
    %c0_116 = arith.constant 0 : index
    %377 = vector.load %arg5[%376, %c0_116] : memref<16x32xf32, #tpu.memory_space<vmem>>, vector<2x32xf32>
    tpu.vector_store %arg5[%376, %c0_116], %375 {strides = array<i32>} : memref<16x32xf32, #tpu.memory_space<vmem>>, vector<2x32xf32>,
    %c8_i32_117 = arith.constant 8 : i32
    return
  }
  func.func @transform_0(%arg0: i32) -> (i32, i32) {
    %c0_i32 = arith.constant 0 : i32
    %c0_i32_0 = arith.constant 0 : i32
    %c0_i32_1 = arith.constant 0 : i32
    return %c0_i32, %c0_i32_0 : i32, i32
  }
  func.func @transform_1(%arg0: i32) -> (i32, i32, i32) {
    %c0_i32 = arith.constant 0 : i32
    %c0_i32_0 = arith.constant 0 : i32
    %c0_i32_1 = arith.constant 0 : i32
    %c0_i32_2 = arith.constant 0 : i32
    return %c0_i32, %c0_i32_0, %c0_i32_1 : i32, i32, i32
  }
  func.func @transform_2(%arg0: i32) -> (i32, i32, i32) {
    %c0_i32 = arith.constant 0 : i32
    %c0_i32_0 = arith.constant 0 : i32
    %c0_i32_1 = arith.constant 0 : i32
    %c0_i32_2 = arith.constant 0 : i32
    return %c0_i32, %c0_i32_0, %c0_i32_1 : i32, i32, i32
  }
  func.func @transform_3(%arg0: i32) -> (i32, i32, i32) {
    %c0_i32 = arith.constant 0 : i32
    %c0_i32_0 = arith.constant 0 : i32
    %c0_i32_1 = arith.constant 0 : i32
    %c0_i32_2 = arith.constant 0 : i32
    return %c0_i32, %c0_i32_0, %c0_i32_1 : i32, i32, i32
  }
  func.func @transform_4(%arg0: i32) -> (i32, i32) {
    %c0_i32 = arith.constant 0 : i32
    %c0_i32_0 = arith.constant 0 : i32
    %c0_i32_1 = arith.constant 0 : i32
    return %c0_i32, %c0_i32_0 : i32, i32
  }
}

</mosaic_0001>

<llo_original>
// kernel: lstm_forward.1
$region0: #{lstm_forward.1}
  #allocation0 [shape = 'u32[]', space=smem, size = 0x4, offset = 0x4, fixed_abs, tag = 'smem constant byte address 0x4 - core index']
  #allocation1 [shape = 'u32[144,128]{1,0:T(1,128)}', space=vmem, size = 0x12000, scoped, tag = 'internal scratch']
  #allocation2 [shape = 'f32[16,128]{1,0:T(8,128)}', space=vmem, size = 0x2000, scoped, tag = 'scratch operand']
  %s0 = inlined_call_operand.vmem [shape: f32[16,32], index: 0, kind: input, shape index: {}]
  %s1 = inlined_call_operand.vmem [shape: f32[2,32,128], index: 1, kind: input, shape index: {}]
  %s2 = inlined_call_operand.vmem [shape: f32[2,32,128], index: 2, kind: input, shape index: {}]
  %s3 = inlined_call_operand.vmem [shape: f32[2,1,128], index: 3, kind: input, shape index: {}]
  %s4 = inlined_call_operand.vmem [shape: f32[16,32], index: 4, kind: output, shape index: {}]
  %s5 = sld [smem:[#allocation0]]
  $region26: #{lstm_forward.1} parent=0
    _
  %s7 = ssub.s32 1, %s5
  %s8 = scalar_select 0, %s7, %s5
  // Predicated region
  $region2: #{lstm_forward.1} parent=0 // pred_check
    _
  $region3: #{lstm_forward.1} parent=0 // pred_check_branch
    %10 = sbr.rel (0) target = $region5
  $region4: #{lstm_forward.1} parent=0 // pred_region
    _
  $region5: #{lstm_forward.1} parent=0 // pred_fallthru
    _
  // Predicated region
  $region6: #{lstm_forward.1} parent=0 // pred_check
    _
  $region7: #{lstm_forward.1} parent=0 // pred_check_branch
    %12 = sbr.rel (0) target = $region9
  $region8: #{lstm_forward.1} parent=0 // pred_region
    _
  $region9: #{lstm_forward.1} parent=0 // pred_fallthru
    _
  // Predicated region
  $region10: #{lstm_forward.1} parent=0 // pred_check
    _
  $region11: #{lstm_forward.1} parent=0 // pred_check_branch
    %14 = sbr.rel (0) target = $region13
  $region12: #{lstm_forward.1} parent=0 // pred_region
    _
  $region13: #{lstm_forward.1} parent=0 // pred_fallthru
    _
  // Predicated region
  $region14: #{lstm_forward.1} parent=0 // pred_check
    _
  $region15: #{lstm_forward.1} parent=0 // pred_check_branch
    %16 = sbr.rel (0) target = $region17
  $region16: #{lstm_forward.1} parent=0 // pred_region
    _
  $region17: #{lstm_forward.1} parent=0 // pred_fallthru
    _
  %v17 = vld [vmem:[%s0] sm:$0xff]
  %v18 = vld [vmem:[%s0 + $0x8] sm:$0xff]
  %v19 = vld [vmem:[%s1] sm:$0xff]
  %v20 = vld [vmem:[%s1 + $0x8] sm:$0xff]
  %v21 = vld [vmem:[%s1 + $0x10] sm:$0xff]
  %v22 = vld [vmem:[%s1 + $0x18] sm:$0xff]
  %v23 = vld [vmem:[%s3] sm:$0x1]
  %v25 = vlaneseq
  %v26 = vshrl.u32 %v25, 7
  %v27 = vsub.s32 0, %v26
  %v28 = vrot.slane %v23, %v27
  %vm30 = vcmask 261120
  %v32 = vsel %vm30, %v17, 0
  %v35 = vsel %vm30, %v18, 0
  %37 = vmatprep.subr.mxu0 0.0
  %38 = vmatpush1.msra.mxu0 %v19
  %39 = vmatprep.subr.mxu0 0.0
  %40 = vmatpush1.msra.mxu0 %v20
  %41 = vmatprep.subr.mxu0 0.0
  %42 = vmatpush1.msra.mxu0 %v21
  %43 = vmatprep.subr.mxu0 0.0
  %44 = vmatpush1.msra.mxu0 %v22
  %45 = vmatprep.subr.mxu0 0.0
  %46 = vmatpush1.msra.mxu0 0.0
  %47 = vmatprep.subr.mxu0 0.0
  %48 = vmatpush1.msra.mxu0 0.0
  %49 = vmatprep.subr.mxu0 0.0
  %50 = vmatpush1.msra.mxu0 0.0
  %51 = vmatprep.subr.mxu0 0.0
  %52 = vmatpush1.msra.mxu0 0.0
  %53 = vmatprep.subr.mxu0 0.0
  %54 = vmatpush1.msra.mxu0 0.0
  %55 = vmatprep.subr.mxu0 0.0
  %56 = vmatpush1.msra.mxu0 0.0
  %57 = vmatprep.subr.mxu0 0.0
  %58 = vmatpush1.msra.mxu0 0.0
  %59 = vmatprep.subr.mxu0 0.0
  %60 = vmatpush1.msra.mxu0 0.0
  %61 = vmatprep.subr.mxu0 0.0
  %62 = vmatpush1.msra.mxu0 0.0
  %63 = vmatprep.subr.mxu0 0.0
  %64 = vmatpush1.msra.mxu0 0.0
  %65 = vmatprep.subr.mxu0 0.0
  %66 = vmatpush1.msra.mxu0 0.0
  %67 = vmatprep.subr.mxu0 0.0
  %68 = vmatpush1.msra.mxu0 0.0
  %69 = vmatprep.subr.mxu0 0.0
  %70 = vmatpush1.msra.mxu0 0.0
  %71 = vmatprep.subr.mxu0 0.0
  %72 = vmatpush1.msra.mxu0 0.0
  %73 = vmatprep.subr.mxu0 0.0
  %74 = vmatpush1.msra.mxu0 0.0
  %75 = vmatprep.subr.mxu0 0.0
  %76 = vmatpush1.msra.mxu0 0.0
  %77 = vmatprep.subr.mxu0 0.0
  %78 = vmatpush1.msra.mxu0 0.0
  %79 = vmatprep.subr.mxu0 0.0
  %80 = vmatpush1.msra.mxu0 0.0
  %81 = vmatprep.subr.mxu0 0.0
  %82 = vmatpush1.msra.mxu0 0.0
  %83 = vmatprep.subr.mxu0 0.0
  %84 = vmatpush1.msra.mxu0 0.0
  %85 = vmatprep.subr.mxu0 0.0
  %86 = vmatpush1.msra.mxu0 0.0
  %87 = vmatprep.subr.mxu0 0.0
  %88 = vmatpush1.msra.mxu0 0.0
  %89 = vmatprep.subr.mxu0 0.0
  %90 = vmatpush1.msra.mxu0 0.0
  %91 = vmatprep.subr.mxu0 0.0
  %92 = vmatpush1.msra.mxu0 0.0
  %93 = vmatprep.subr.mxu0 0.0
  %94 = vmatpush1.msra.mxu0 0.0
  %95 = vmatprep.subr.mxu0 0.0
  %96 = vmatpush1.msra.mxu0 0.0
  %97 = vmatprep.subr.mxu0 0.0
  %98 = vmatpush1.msra.mxu0 0.0
  %99 = vmatprep.subr.mxu0 0.0
  %100 = vmatpush1.msra.mxu0 0.0
  %101 = vmatprep.mubr.f32.mxu0 0.0
  %102 = vmatmul.mubr.f32.gmra.mrb[0].mxu0 %v32
  %v103 = vpop.f32.mrb[0].mxu0
  %v104 = vadd.f32 %v28, %v103
  %v105 = vpop.f32.mrb[0].mxu0
  %106 = vmatprep.mubr.f32.mxu0 0.0
  %107 = vmatmul.mubr.f32.gmra.mrb[0].mxu0 %v35
  %v108 = vpop.f32.mrb[0].mxu0
  %v109 = vadd.f32 %v28, %v108
  %v110 = vpop.f32.mrb[0].mxu0
  %111 = vdwg.mxu0
  %112 = vst [vmem:[#allocation2] sm:$0xff] %v104
  %113 = vst [vmem:[#allocation2 + $0x8] sm:$0xff] %v109
  %v114 = vld [vmem:[%s2] sm:$0xff]
  %v115 = vld [vmem:[%s2 + $0x8] sm:$0xff]
  %v116 = vld [vmem:[%s2 + $0x10] sm:$0xff]
  %v117 = vld [vmem:[%s2 + $0x18] sm:$0xff]
  %v118 = vld [vmem:[#allocation2] sm:$0x3]
  %v120 = vsel %vm30, 0.0, 0
  %122 = vmatprep.subr.mxu0 0.0
  %123 = vmatpush1.msra.mxu0 %v114
  %124 = vmatprep.subr.mxu0 0.0
  %125 = vmatpush1.msra.mxu0 %v115
  %126 = vmatprep.subr.mxu0 0.0
  %127 = vmatpush1.msra.mxu0 %v116
  %128 = vmatprep.subr.mxu0 0.0
  %129 = vmatpush1.msra.mxu0 %v117
  %130 = vmatprep.subr.mxu0 0.0
  %131 = vmatpush1.msra.mxu0 0.0
  %132 = vmatprep.subr.mxu0 0.0
  %133 = vmatpush1.msra.mxu0 0.0
  %134 = vmatprep.subr.mxu0 0.0
  %135 = vmatpush1.msra.mxu0 0.0
  %136 = vmatprep.subr.mxu0 0.0
  %137 = vmatpush1.msra.mxu0 0.0
  %138 = vmatprep.subr.mxu0 0.0
  %139 = vmatpush1.msra.mxu0 0.0
  %140 = vmatprep.subr.mxu0 0.0
  %141 = vmatpush1.msra.mxu0 0.0
  %142 = vmatprep.subr.mxu0 0.0
  %143 = vmatpush1.msra.mxu0 0.0
  %144 = vmatprep.subr.mxu0 0.0
  %145 = vmatpush1.msra.mxu0 0.0
  %146 = vmatprep.subr.mxu0 0.0
  %147 = vmatpush1.msra.mxu0 0.0
  %148 = vmatprep.subr.mxu0 0.0
  %149 = vmatpush1.msra.mxu0 0.0
  %150 = vmatprep.subr.mxu0 0.0
  %151 = vmatpush1.msra.mxu0 0.0
  %152 = vmatprep.subr.mxu0 0.0
  %153 = vmatpush1.msra.mxu0 0.0
  %154 = vmatprep.subr.mxu0 0.0
  %155 = vmatpush1.msra.mxu0 0.0
  %156 = vmatprep.subr.mxu0 0.0
  %157 = vmatpush1.msra.mxu0 0.0
  %158 = vmatprep.subr.mxu0 0.0
  %159 = vmatpush1.msra.mxu0 0.0
  %160 = vmatprep.subr.mxu0 0.0
  %161 = vmatpush1.msra.mxu0 0.0
  %162 = vmatprep.subr.mxu0 0.0
  %163 = vmatpush1.msra.mxu0 0.0
  %164 = vmatprep.subr.mxu0 0.0
  %165 = vmatpush1.msra.mxu0 0.0
  %166 = vmatprep.subr.mxu0 0.0
  %167 = vmatpush1.msra.mxu0 0.0
  %168 = vmatprep.subr.mxu0 0.0
  %169 = vmatpush1.msra.mxu0 0.0
  %170 = vmatprep.subr.mxu0 0.0
  %171 = vmatpush1.msra.mxu0 0.0
  %172 = vmatprep.subr.mxu0 0.0
  %173 = vmatpush1.msra.mxu0 0.0
  %174 = vmatprep.subr.mxu0 0.0
  %175 = vmatpush1.msra.mxu0 0.0
  %176 = vmatprep.subr.mxu0 0.0
  %177 = vmatpush1.msra.mxu0 0.0
  %178 = vmatprep.subr.mxu0 0.0
  %179 = vmatpush1.msra.mxu0 0.0
  %180 = vmatprep.subr.mxu0 0.0
  %181 = vmatpush1.msra.mxu0 0.0
  %182 = vmatprep.subr.mxu0 0.0
  %183 = vmatpush1.msra.mxu0 0.0
  %184 = vmatprep.subr.mxu0 0.0
  %185 = vmatpush1.msra.mxu0 0.0
  %186 = vmatprep.mubr.f32.mxu0 0.0
  %187 = vmatmul.mubr.f32.gmra.mrb[0].mxu0 %v120
  %v188 = vpop.f32.mrb[0].mxu0
  %v189 = vadd.f32 0.0, %v188
  %v190 = vpop.f32.mrb[0].mxu0
  %191 = vdwg.mxu0
  %v192 = vadd.f32 %v118, %v189
  %v193 = vxor.u32 %v192, 2147483648
  %v194 = vmul.f32 %v193, 1.442695
  %v195 = vpow.pop %v194
  %v196 = vadd.f32 %v195, 1.0
  %v197 = vrcp.pop %v196
  %v198 = vmul.f32 1.0, %v197
  %v199 = vtanh.pop %v192
  %v200 = vmul.f32 %v198, 0.0
  %202 = vrot.lane.b32.xlu0 %v199, 64
  %v203 = vpop.permute.xlu0 %202
  %v205 = vmul.f32 %v198, %v203
  %207 = vrot.lane.b32.xlu0 %v205, 32
  %v208 = vpop.permute.xlu0 %207
  %v210 = vadd.f32 %v200, %v208
  %v211 = vtanh.pop %v210
  %213 = vrot.lane.b32.xlu0 %v211, 64
  %v214 = vpop.permute.xlu0 %213
  %v216 = vmul.f32 %v198, %v214
  %218 = vrot.lane.b32.xlu0 %v216, 32
  %v219 = vpop.permute.xlu0 %218
  %vm221 = vcmask 254976
  %222 = vst.msk [vmem:[%s4] sm:$0x3] %vm221, %v219
  %v223 = vld [vmem:[#allocation2 + $0x2] sm:$0x3]
  %v224 = vsel %vm30, %v219, 0
  %226 = vmatprep.subr.mxu0 0.0
  %227 = vmatpush1.msra.mxu0 %v114
  %228 = vmatprep.subr.mxu0 0.0
  %229 = vmatpush1.msra.mxu0 %v115
  %230 = vmatprep.subr.mxu0 0.0
  %231 = vmatpush1.msra.mxu0 %v116
  %232 = vmatprep.subr.mxu0 0.0
  %233 = vmatpush1.msra.mxu0 %v117
  %234 = vmatprep.subr.mxu0 0.0
  %235 = vmatpush1.msra.mxu0 0.0
  %236 = vmatprep.subr.mxu0 0.0
  %237 = vmatpush1.msra.mxu0 0.0
  %238 = vmatprep.subr.mxu0 0.0
  %239 = vmatpush1.msra.mxu0 0.0
  %240 = vmatprep.subr.mxu0 0.0
  %241 = vmatpush1.msra.mxu0 0.0
  %242 = vmatprep.subr.mxu0 0.0
  %243 = vmatpush1.msra.mxu0 0.0
  %244 = vmatprep.subr.mxu0 0.0
  %245 = vmatpush1.msra.mxu0 0.0
  %246 = vmatprep.subr.mxu0 0.0
  %247 = vmatpush1.msra.mxu0 0.0
  %248 = vmatprep.subr.mxu0 0.0
  %249 = vmatpush1.msra.mxu0 0.0
  %250 = vmatprep.subr.mxu0 0.0
  %251 = vmatpush1.msra.mxu0 0.0
  %252 = vmatprep.subr.mxu0 0.0
  %253 = vmatpush1.msra.mxu0 0.0
  %254 = vmatprep.subr.mxu0 0.0
  %255 = vmatpush1.msra.mxu0 0.0
  %256 = vmatprep.subr.mxu0 0.0
  %257 = vmatpush1.msra.mxu0 0.0
  %258 = vmatprep.subr.mxu0 0.0
  %259 = vmatpush1.msra.mxu0 0.0
  %260 = vmatprep.subr.mxu0 0.0
  %261 = vmatpush1.msra.mxu0 0.0
  %262 = vmatprep.subr.mxu0 0.0
  %263 = vmatpush1.msra.mxu0 0.0
  %264 = vmatprep.subr.mxu0 0.0
  %265 = vmatpush1.msra.mxu0 0.0
  %266 = vmatprep.subr.mxu0 0.0
  %267 = vmatpush1.msra.mxu0 0.0
  %268 = vmatprep.subr.mxu0 0.0
  %269 = vmatpush1.msra.mxu0 0.0
  %270 = vmatprep.subr.mxu0 0.0
  %271 = vmatpush1.msra.mxu0 0.0
  %272 = vmatprep.subr.mxu0 0.0
  %273 = vmatpush1.msra.mxu0 0.0
  %274 = vmatprep.subr.mxu0 0.0
  %275 = vmatpush1.msra.mxu0 0.0
  %276 = vmatprep.subr.mxu0 0.0
  %277 = vmatpush1.msra.mxu0 0.0
  %278 = vmatprep.subr.mxu0 0.0
  %279 = vmatpush1.msra.mxu0 0.0
  %280 = vmatprep.subr.mxu0 0.0
  %281 = vmatpush1.msra.mxu0 0.0
  %282 = vmatprep.subr.mxu0 0.0
  %283 = vmatpush1.msra.mxu0 0.0
  %284 = vmatprep.subr.mxu0 0.0
  %285 = vmatpush1.msra.mxu0 0.0
  %286 = vmatprep.subr.mxu0 0.0
  %287 = vmatpush1.msra.mxu0 0.0
  %288 = vmatprep.subr.mxu0 0.0
  %289 = vmatpush1.msra.mxu0 0.0
  %290 = vmatprep.mubr.f32.mxu0 0.0
  %291 = vmatmul.mubr.f32.gmra.mrb[0].mxu0 %v224
  %v292 = vpop.f32.mrb[0].mxu0
  %v293 = vadd.f32 0.0, %v292
  %v294 = vpop.f32.mrb[0].mxu0
  %295 = vdwg.mxu0
  %v296 = vadd.f32 %v223, %v293
  %v297 = vxor.u32 %v296, 2147483648
  %v298 = vmul.f32 %v297, 1.442695
  %v299 = vpow.pop %v298
  %v300 = vadd.f32 %v299, 1.0
  %v301 = vrcp.pop %v300
  %v302 = vmul.f32 1.0, %v301
  %v303 = vtanh.pop %v296
  %v304 = vmul.f32 %v302, %v210
  %306 = vrot.lane.b32.xlu0 %v303, 64
  %v307 = vpop.permute.xlu0 %306
  %v309 = vmul.f32 %v302, %v307
  %311 = vrot.lane.b32.xlu0 %v309, 32
  %v312 = vpop.permute.xlu0 %311
  %v314 = vadd.f32 %v304, %v312
  %v315 = vtanh.pop %v314
  %317 = vrot.lane.b32.xlu0 %v315, 64
  %v318 = vpop.permute.xlu0 %317
  %v320 = vmul.f32 %v302, %v318
  %322 = vrot.lane.b32.xlu0 %v320, 32
  %v323 = vpop.permute.xlu0 %322
  %325 = vst.msk [vmem:[%s4 + $0x2] sm:$0x3] %vm221, %v323
  %v326 = vld [vmem:[#allocation2 + $0x4] sm:$0x3]
  %v327 = vsel %vm30, %v323, 0
  %329 = vmatprep.subr.mxu0 0.0
  %330 = vmatpush1.msra.mxu0 %v114
  %331 = vmatprep.subr.mxu0 0.0
  %332 = vmatpush1.msra.mxu0 %v115
  %333 = vmatprep.subr.mxu0 0.0
  %334 = vmatpush1.msra.mxu0 %v116
  %335 = vmatprep.subr.mxu0 0.0
  %336 = vmatpush1.msra.mxu0 %v117
  %337 = vmatprep.subr.mxu0 0.0
  %338 = vmatpush1.msra.mxu0 0.0
  %339 = vmatprep.subr.mxu0 0.0
  %340 = vmatpush1.msra.mxu0 0.0
  %341 = vmatprep.subr.mxu0 0.0
  %342 = vmatpush1.msra.mxu0 0.0
  %343 = vmatprep.subr.mxu0 0.0
  %344 = vmatpush1.msra.mxu0 0.0
  %345 = vmatprep.subr.mxu0 0.0
  %346 = vmatpush1.msra.mxu0 0.0
  %347 = vmatprep.subr.mxu0 0.0
  %348 = vmatpush1.msra.mxu0 0.0
  %349 = vmatprep.subr.mxu0 0.0
  %350 = vmatpush1.msra.mxu0 0.0
  %351 = vmatprep.subr.mxu0 0.0
  %352 = vmatpush1.msra.mxu0 0.0
  %353 = vmatprep.subr.mxu0 0.0
  %354 = vmatpush1.msra.mxu0 0.0
  %355 = vmatprep.subr.mxu0 0.0
  %356 = vmatpush1.msra.mxu0 0.0
  %357 = vmatprep.subr.mxu0 0.0
  %358 = vmatpush1.msra.mxu0 0.0
  %359 = vmatprep.subr.mxu0 0.0
  %360 = vmatpush1.msra.mxu0 0.0
  %361 = vmatprep.subr.mxu0 0.0
  %362 = vmatpush1.msra.mxu0 0.0
  %363 = vmatprep.subr.mxu0 0.0
  %364 = vmatpush1.msra.mxu0 0.0
  %365 = vmatprep.subr.mxu0 0.0
  %366 = vmatpush1.msra.mxu0 0.0
  %367 = vmatprep.subr.mxu0 0.0
  %368 = vmatpush1.msra.mxu0 0.0
  %369 = vmatprep.subr.mxu0 0.0
  %370 = vmatpush1.msra.mxu0 0.0
  %371 = vmatprep.subr.mxu0 0.0
  %372 = vmatpush1.msra.mxu0 0.0
  %373 = vmatprep.subr.mxu0 0.0
  %374 = vmatpush1.msra.mxu0 0.0
  %375 = vmatprep.subr.mxu0 0.0
  %376 = vmatpush1.msra.mxu0 0.0
  %377 = vmatprep.subr.mxu0 0.0
  %378 = vmatpush1.msra.mxu0 0.0
  %379 = vmatprep.subr.mxu0 0.0
  %380 = vmatpush1.msra.mxu0 0.0
  %381 = vmatprep.subr.mxu0 0.0
  %382 = vmatpush1.msra.mxu0 0.0
  %383 = vmatprep.subr.mxu0 0.0
  %384 = vmatpush1.msra.mxu0 0.0
  %385 = vmatprep.subr.mxu0 0.0
  %386 = vmatpush1.msra.mxu0 0.0
  %387 = vmatprep.subr.mxu0 0.0
  %388 = vmatpush1.msra.mxu0 0.0
  %389 = vmatprep.subr.mxu0 0.0
  %390 = vmatpush1.msra.mxu0 0.0
  %391 = vmatprep.subr.mxu0 0.0
  %392 = vmatpush1.msra.mxu0 0.0
  %393 = vmatprep.mubr.f32.mxu0 0.0
  %394 = vmatmul.mubr.f32.gmra.mrb[0].mxu0 %v327
  %v395 = vpop.f32.mrb[0].mxu0
  %v396 = vadd.f32 0.0, %v395
  %v397 = vpop.f32.mrb[0].mxu0
  %398 = vdwg.mxu0
  %v399 = vadd.f32 %v326, %v396
  %v400 = vxor.u32 %v399, 2147483648
  %v401 = vmul.f32 %v400, 1.442695
  %v402 = vpow.pop %v401
  %v403 = vadd.f32 %v402, 1.0
  %v404 = vrcp.pop %v403
  %v405 = vmul.f32 1.0, %v404
  %v406 = vtanh.pop %v399
  %v407 = vmul.f32 %v405, %v314
  %409 = vrot.lane.b32.xlu0 %v406, 64
  %v410 = vpop.permute.xlu0 %409
  %v412 = vmul.f32 %v405, %v410
  %414 = vrot.lane.b32.xlu0 %v412, 32
  %v415 = vpop.permute.xlu0 %414
  %v417 = vadd.f32 %v407, %v415
  %v418 = vtanh.pop %v417
  %420 = vrot.lane.b32.xlu0 %v418, 64
  %v421 = vpop.permute.xlu0 %420
  %v423 = vmul.f32 %v405, %v421
  %425 = vrot.lane.b32.xlu0 %v423, 32
  %v426 = vpop.permute.xlu0 %425
  %428 = vst.msk [vmem:[%s4 + $0x4] sm:$0x3] %vm221, %v426
  %v429 = vld [vmem:[#allocation2 + $0x6] sm:$0x3]
  %v430 = vsel %vm30, %v426, 0
  %432 = vmatprep.subr.mxu0 0.0
  %433 = vmatpush1.msra.mxu0 %v114
  %434 = vmatprep.subr.mxu0 0.0
  %435 = vmatpush1.msra.mxu0 %v115
  %436 = vmatprep.subr.mxu0 0.0
  %437 = vmatpush1.msra.mxu0 %v116
  %438 = vmatprep.subr.mxu0 0.0
  %439 = vmatpush1.msra.mxu0 %v117
  %440 = vmatprep.subr.mxu0 0.0
  %441 = vmatpush1.msra.mxu0 0.0
  %442 = vmatprep.subr.mxu0 0.0
  %443 = vmatpush1.msra.mxu0 0.0
  %444 = vmatprep.subr.mxu0 0.0
  %445 = vmatpush1.msra.mxu0 0.0
  %446 = vmatprep.subr.mxu0 0.0
  %447 = vmatpush1.msra.mxu0 0.0
  %448 = vmatprep.subr.mxu0 0.0
  %449 = vmatpush1.msra.mxu0 0.0
  %450 = vmatprep.subr.mxu0 0.0
  %451 = vmatpush1.msra.mxu0 0.0
  %452 = vmatprep.subr.mxu0 0.0
  %453 = vmatpush1.msra.mxu0 0.0
  %454 = vmatprep.subr.mxu0 0.0
  %455 = vmatpush1.msra.mxu0 0.0
  %456 = vmatprep.subr.mxu0 0.0
  %457 = vmatpush1.msra.mxu0 0.0
  %458 = vmatprep.subr.mxu0 0.0
  %459 = vmatpush1.msra.mxu0 0.0
  %460 = vmatprep.subr.mxu0 0.0
  %461 = vmatpush1.msra.mxu0 0.0
  %462 = vmatprep.subr.mxu0 0.0
  %463 = vmatpush1.msra.mxu0 0.0
  %464 = vmatprep.subr.mxu0 0.0
  %465 = vmatpush1.msra.mxu0 0.0
  %466 = vmatprep.subr.mxu0 0.0
  %467 = vmatpush1.msra.mxu0 0.0
  %468 = vmatprep.subr.mxu0 0.0
  %469 = vmatpush1.msra.mxu0 0.0
  %470 = vmatprep.subr.mxu0 0.0
  %471 = vmatpush1.msra.mxu0 0.0
  %472 = vmatprep.subr.mxu0 0.0
  %473 = vmatpush1.msra.mxu0 0.0
  %474 = vmatprep.subr.mxu0 0.0
  %475 = vmatpush1.msra.mxu0 0.0
  %476 = vmatprep.subr.mxu0 0.0
  %477 = vmatpush1.msra.mxu0 0.0
  %478 = vmatprep.subr.mxu0 0.0
  %479 = vmatpush1.msra.mxu0 0.0
  %480 = vmatprep.subr.mxu0 0.0
  %481 = vmatpush1.msra.mxu0 0.0
  %482 = vmatprep.subr.mxu0 0.0
  %483 = vmatpush1.msra.mxu0 0.0
  %484 = vmatprep.subr.mxu0 0.0
  %485 = vmatpush1.msra.mxu0 0.0
  %486 = vmatprep.subr.mxu0 0.0
  %487 = vmatpush1.msra.mxu0 0.0
  %488 = vmatprep.subr.mxu0 0.0
  %489 = vmatpush1.msra.mxu0 0.0
  %490 = vmatprep.subr.mxu0 0.0
  %491 = vmatpush1.msra.mxu0 0.0
  %492 = vmatprep.subr.mxu0 0.0
  %493 = vmatpush1.msra.mxu0 0.0
  %494 = vmatprep.subr.mxu0 0.0
  %495 = vmatpush1.msra.mxu0 0.0
  %496 = vmatprep.mubr.f32.mxu0 0.0
  %497 = vmatmul.mubr.f32.gmra.mrb[0].mxu0 %v430
  %v498 = vpop.f32.mrb[0].mxu0
  %v499 = vadd.f32 0.0, %v498
  %v500 = vpop.f32.mrb[0].mxu0
  %501 = vdwg.mxu0
  %v502 = vadd.f32 %v429, %v499
  %v503 = vxor.u32 %v502, 2147483648
  %v504 = vmul.f32 %v503, 1.442695
  %v505 = vpow.pop %v504
  %v506 = vadd.f32 %v505, 1.0
  %v507 = vrcp.pop %v506
  %v508 = vmul.f32 1.0, %v507
  %v509 = vtanh.pop %v502
  %v510 = vmul.f32 %v508, %v417
  %512 = vrot.lane.b32.xlu0 %v509, 64
  %v513 = vpop.permute.xlu0 %512
  %v515 = vmul.f32 %v508, %v513
  %517 = vrot.lane.b32.xlu0 %v515, 32
  %v518 = vpop.permute.xlu0 %517
  %v520 = vadd.f32 %v510, %v518
  %v521 = vtanh.pop %v520
  %523 = vrot.lane.b32.xlu0 %v521, 64
  %v524 = vpop.permute.xlu0 %523
  %v526 = vmul.f32 %v508, %v524
  %528 = vrot.lane.b32.xlu0 %v526, 32
  %v529 = vpop.permute.xlu0 %528
  %531 = vst.msk [vmem:[%s4 + $0x6] sm:$0x3] %vm221, %v529
  %v532 = vld [vmem:[#allocation2 + $0x8] sm:$0x3]
  %v533 = vsel %vm30, %v529, 0
  %535 = vmatprep.subr.mxu0 0.0
  %536 = vmatpush1.msra.mxu0 %v114
  %537 = vmatprep.subr.mxu0 0.0
  %538 = vmatpush1.msra.mxu0 %v115
  %539 = vmatprep.subr.mxu0 0.0
  %540 = vmatpush1.msra.mxu0 %v116
  %541 = vmatprep.subr.mxu0 0.0
  %542 = vmatpush1.msra.mxu0 %v117
  %543 = vmatprep.subr.mxu0 0.0
  %544 = vmatpush1.msra.mxu0 0.0
  %545 = vmatprep.subr.mxu0 0.0
  %546 = vmatpush1.msra.mxu0 0.0
  %547 = vmatprep.subr.mxu0 0.0
  %548 = vmatpush1.msra.mxu0 0.0
  %549 = vmatprep.subr.mxu0 0.0
  %550 = vmatpush1.msra.mxu0 0.0
  %551 = vmatprep.subr.mxu0 0.0
  %552 = vmatpush1.msra.mxu0 0.0
  %553 = vmatprep.subr.mxu0 0.0
  %554 = vmatpush1.msra.mxu0 0.0
  %555 = vmatprep.subr.mxu0 0.0
  %556 = vmatpush1.msra.mxu0 0.0
  %557 = vmatprep.subr.mxu0 0.0
  %558 = vmatpush1.msra.mxu0 0.0
  %559 = vmatprep.subr.mxu0 0.0
  %560 = vmatpush1.msra.mxu0 0.0
  %561 = vmatprep.subr.mxu0 0.0
  %562 = vmatpush1.msra.mxu0 0.0
  %563 = vmatprep.subr.mxu0 0.0
  %564 = vmatpush1.msra.mxu0 0.0
  %565 = vmatprep.subr.mxu0 0.0
  %566 = vmatpush1.msra.mxu0 0.0
  %567 = vmatprep.subr.mxu0 0.0
  %568 = vmatpush1.msra.mxu0 0.0
  %569 = vmatprep.subr.mxu0 0.0
  %570 = vmatpush1.msra.mxu0 0.0
  %571 = vmatprep.subr.mxu0 0.0
  %572 = vmatpush1.msra.mxu0 0.0
  %573 = vmatprep.subr.mxu0 0.0
  %574 = vmatpush1.msra.mxu0 0.0
  %575 = vmatprep.subr.mxu0 0.0
  %576 = vmatpush1.msra.mxu0 0.0
  %577 = vmatprep.subr.mxu0 0.0
  %578 = vmatpush1.msra.mxu0 0.0
  %579 = vmatprep.subr.mxu0 0.0
  %580 = vmatpush1.msra.mxu0 0.0
  %581 = vmatprep.subr.mxu0 0.0
  %582 = vmatpush1.msra.mxu0 0.0
  %583 = vmatprep.subr.mxu0 0.0
  %584 = vmatpush1.msra.mxu0 0.0
  %585 = vmatprep.subr.mxu0 0.0
  %586 = vmatpush1.msra.mxu0 0.0
  %587 = vmatprep.subr.mxu0 0.0
  %588 = vmatpush1.msra.mxu0 0.0
  %589 = vmatprep.subr.mxu0 0.0
  %590 = vmatpush1.msra.mxu0 0.0
  %591 = vmatprep.subr.mxu0 0.0
  %592 = vmatpush1.msra.mxu0 0.0
  %593 = vmatprep.subr.mxu0 0.0
  %594 = vmatpush1.msra.mxu0 0.0
  %595 = vmatprep.subr.mxu0 0.0
  %596 = vmatpush1.msra.mxu0 0.0
  %597 = vmatprep.subr.mxu0 0.0
  %598 = vmatpush1.msra.mxu0 0.0
  %599 = vmatprep.mubr.f32.mxu0 0.0
  %600 = vmatmul.mubr.f32.gmra.mrb[0].mxu0 %v533
  %v601 = vpop.f32.mrb[0].mxu0
  %v602 = vadd.f32 0.0, %v601
  %v603 = vpop.f32.mrb[0].mxu0
  %604 = vdwg.mxu0
  %v605 = vadd.f32 %v532, %v602
  %v606 = vxor.u32 %v605, 2147483648
  %v607 = vmul.f32 %v606, 1.442695
  %v608 = vpow.pop %v607
  %v609 = vadd.f32 %v608, 1.0
  %v610 = vrcp.pop %v609
  %v611 = vmul.f32 1.0, %v610
  %v612 = vtanh.pop %v605
  %v613 = vmul.f32 %v611, %v520
  %615 = vrot.lane.b32.xlu0 %v612, 64
  %v616 = vpop.permute.xlu0 %615
  %v618 = vmul.f32 %v611, %v616
  %620 = vrot.lane.b32.xlu0 %v618, 32
  %v621 = vpop.permute.xlu0 %620
  %v623 = vadd.f32 %v613, %v621
  %v624 = vtanh.pop %v623
  %626 = vrot.lane.b32.xlu0 %v624, 64
  %v627 = vpop.permute.xlu0 %626
  %v629 = vmul.f32 %v611, %v627
  %631 = vrot.lane.b32.xlu0 %v629, 32
  %v632 = vpop.permute.xlu0 %631
  %634 = vst.msk [vmem:[%s4 + $0x8] sm:$0x3] %vm221, %v632
  %v635 = vld [vmem:[#allocation2 + $0xa] sm:$0x3]
  %v636 = vsel %vm30, %v632, 0
  %638 = vmatprep.subr.mxu0 0.0
  %639 = vmatpush1.msra.mxu0 %v114
  %640 = vmatprep.subr.mxu0 0.0
  %641 = vmatpush1.msra.mxu0 %v115
  %642 = vmatprep.subr.mxu0 0.0
  %643 = vmatpush1.msra.mxu0 %v116
  %644 = vmatprep.subr.mxu0 0.0
  %645 = vmatpush1.msra.mxu0 %v117
  %646 = vmatprep.subr.mxu0 0.0
  %647 = vmatpush1.msra.mxu0 0.0
  %648 = vmatprep.subr.mxu0 0.0
  %649 = vmatpush1.msra.mxu0 0.0
  %650 = vmatprep.subr.mxu0 0.0
  %651 = vmatpush1.msra.mxu0 0.0
  %652 = vmatprep.subr.mxu0 0.0
  %653 = vmatpush1.msra.mxu0 0.0
  %654 = vmatprep.subr.mxu0 0.0
  %655 = vmatpush1.msra.mxu0 0.0
  %656 = vmatprep.subr.mxu0 0.0
  %657 = vmatpush1.msra.mxu0 0.0
  %658 = vmatprep.subr.mxu0 0.0
  %659 = vmatpush1.msra.mxu0 0.0
  %660 = vmatprep.subr.mxu0 0.0
  %661 = vmatpush1.msra.mxu0 0.0
  %662 = vmatprep.subr.mxu0 0.0
  %663 = vmatpush1.msra.mxu0 0.0
  %664 = vmatprep.subr.mxu0 0.0
  %665 = vmatpush1.msra.mxu0 0.0
  %666 = vmatprep.subr.mxu0 0.0
  %667 = vmatpush1.msra.mxu0 0.0
  %668 = vmatprep.subr.mxu0 0.0
  %669 = vmatpush1.msra.mxu0 0.0
  %670 = vmatprep.subr.mxu0 0.0
  %671 = vmatpush1.msra.mxu0 0.0
  %672 = vmatprep.subr.mxu0 0.0
  %673 = vmatpush1.msra.mxu0 0.0
  %674 = vmatprep.subr.mxu0 0.0
  %675 = vmatpush1.msra.mxu0 0.0
  %676 = vmatprep.subr.mxu0 0.0
  %677 = vmatpush1.msra.mxu0 0.0
  %678 = vmatprep.subr.mxu0 0.0
  %679 = vmatpush1.msra.mxu0 0.0
  %680 = vmatprep.subr.mxu0 0.0
  %681 = vmatpush1.msra.mxu0 0.0
  %682 = vmatprep.subr.mxu0 0.0
  %683 = vmatpush1.msra.mxu0 0.0
  %684 = vmatprep.subr.mxu0 0.0
  %685 = vmatpush1.msra.mxu0 0.0
  %686 = vmatprep.subr.mxu0 0.0
  %687 = vmatpush1.msra.mxu0 0.0
  %688 = vmatprep.subr.mxu0 0.0
  %689 = vmatpush1.msra.mxu0 0.0
  %690 = vmatprep.subr.mxu0 0.0
  %691 = vmatpush1.msra.mxu0 0.0
  %692 = vmatprep.subr.mxu0 0.0
  %693 = vmatpush1.msra.mxu0 0.0
  %694 = vmatprep.subr.mxu0 0.0
  %695 = vmatpush1.msra.mxu0 0.0
  %696 = vmatprep.subr.mxu0 0.0
  %697 = vmatpush1.msra.mxu0 0.0
  %698 = vmatprep.subr.mxu0 0.0
  %699 = vmatpush1.msra.mxu0 0.0
  %700 = vmatprep.subr.mxu0 0.0
  %701 = vmatpush1.msra.mxu0 0.0
  %702 = vmatprep.mubr.f32.mxu0 0.0
  %703 = vmatmul.mubr.f32.gmra.mrb[0].mxu0 %v636
  %v704 = vpop.f32.mrb[0].mxu0
  %v705 = vadd.f32 0.0, %v704
  %v706 = vpop.f32.mrb[0].mxu0
  %707 = vdwg.mxu0
  %v708 = vadd.f32 %v635, %v705
  %v709 = vxor.u32 %v708, 2147483648
  %v710 = vmul.f32 %v709, 1.442695
  %v711 = vpow.pop %v710
  %v712 = vadd.f32 %v711, 1.0
  %v713 = vrcp.pop %v712
  %v714 = vmul.f32 1.0, %v713
  %v715 = vtanh.pop %v708
  %v716 = vmul.f32 %v714, %v623
  %718 = vrot.lane.b32.xlu0 %v715, 64
  %v719 = vpop.permute.xlu0 %718
  %v721 = vmul.f32 %v714, %v719
  %723 = vrot.lane.b32.xlu0 %v721, 32
  %v724 = vpop.permute.xlu0 %723
  %v726 = vadd.f32 %v716, %v724
  %v727 = vtanh.pop %v726
  %729 = vrot.lane.b32.xlu0 %v727, 64
  %v730 = vpop.permute.xlu0 %729
  %v732 = vmul.f32 %v714, %v730
  %734 = vrot.lane.b32.xlu0 %v732, 32
  %v735 = vpop.permute.xlu0 %734
  %737 = vst.msk [vmem:[%s4 + $0xa] sm:$0x3] %vm221, %v735
  %v738 = vld [vmem:[#allocation2 + $0xc] sm:$0x3]
  %v739 = vsel %vm30, %v735, 0
  %741 = vmatprep.subr.mxu0 0.0
  %742 = vmatpush1.msra.mxu0 %v114
  %743 = vmatprep.subr.mxu0 0.0
  %744 = vmatpush1.msra.mxu0 %v115
  %745 = vmatprep.subr.mxu0 0.0
  %746 = vmatpush1.msra.mxu0 %v116
  %747 = vmatprep.subr.mxu0 0.0
  %748 = vmatpush1.msra.mxu0 %v117
  %749 = vmatprep.subr.mxu0 0.0
  %750 = vmatpush1.msra.mxu0 0.0
  %751 = vmatprep.subr.mxu0 0.0
  %752 = vmatpush1.msra.mxu0 0.0
  %753 = vmatprep.subr.mxu0 0.0
  %754 = vmatpush1.msra.mxu0 0.0
  %755 = vmatprep.subr.mxu0 0.0
  %756 = vmatpush1.msra.mxu0 0.0
  %757 = vmatprep.subr.mxu0 0.0
  %758 = vmatpush1.msra.mxu0 0.0
  %759 = vmatprep.subr.mxu0 0.0
  %760 = vmatpush1.msra.mxu0 0.0
  %761 = vmatprep.subr.mxu0 0.0
  %762 = vmatpush1.msra.mxu0 0.0
  %763 = vmatprep.subr.mxu0 0.0
  %764 = vmatpush1.msra.mxu0 0.0
  %765 = vmatprep.subr.mxu0 0.0
  %766 = vmatpush1.msra.mxu0 0.0
  %767 = vmatprep.subr.mxu0 0.0
  %768 = vmatpush1.msra.mxu0 0.0
  %769 = vmatprep.subr.mxu0 0.0
  %770 = vmatpush1.msra.mxu0 0.0
  %771 = vmatprep.subr.mxu0 0.0
  %772 = vmatpush1.msra.mxu0 0.0
  %773 = vmatprep.subr.mxu0 0.0
  %774 = vmatpush1.msra.mxu0 0.0
  %775 = vmatprep.subr.mxu0 0.0
  %776 = vmatpush1.msra.mxu0 0.0
  %777 = vmatprep.subr.mxu0 0.0
  %778 = vmatpush1.msra.mxu0 0.0
  %779 = vmatprep.subr.mxu0 0.0
  %780 = vmatpush1.msra.mxu0 0.0
  %781 = vmatprep.subr.mxu0 0.0
  %782 = vmatpush1.msra.mxu0 0.0
  %783 = vmatprep.subr.mxu0 0.0
  %784 = vmatpush1.msra.mxu0 0.0
  %785 = vmatprep.subr.mxu0 0.0
  %786 = vmatpush1.msra.mxu0 0.0
  %787 = vmatprep.subr.mxu0 0.0
  %788 = vmatpush1.msra.mxu0 0.0
  %789 = vmatprep.subr.mxu0 0.0
  %790 = vmatpush1.msra.mxu0 0.0
  %791 = vmatprep.subr.mxu0 0.0
  %792 = vmatpush1.msra.mxu0 0.0
  %793 = vmatprep.subr.mxu0 0.0
  %794 = vmatpush1.msra.mxu0 0.0
  %795 = vmatprep.subr.mxu0 0.0
  %796 = vmatpush1.msra.mxu0 0.0
  %797 = vmatprep.subr.mxu0 0.0
  %798 = vmatpush1.msra.mxu0 0.0
  %799 = vmatprep.subr.mxu0 0.0
  %800 = vmatpush1.msra.mxu0 0.0
  %801 = vmatprep.subr.mxu0 0.0
  %802 = vmatpush1.msra.mxu0 0.0
  %803 = vmatprep.subr.mxu0 0.0
  %804 = vmatpush1.msra.mxu0 0.0
  %805 = vmatprep.mubr.f32.mxu0 0.0
  %806 = vmatmul.mubr.f32.gmra.mrb[0].mxu0 %v739
  %v807 = vpop.f32.mrb[0].mxu0
  %v808 = vadd.f32 0.0, %v807
  %v809 = vpop.f32.mrb[0].mxu0
  %810 = vdwg.mxu0
  %v811 = vadd.f32 %v738, %v808
  %v812 = vxor.u32 %v811, 2147483648
  %v813 = vmul.f32 %v812, 1.442695
  %v814 = vpow.pop %v813
  %v815 = vadd.f32 %v814, 1.0
  %v816 = vrcp.pop %v815
  %v817 = vmul.f32 1.0, %v816
  %v818 = vtanh.pop %v811
  %v819 = vmul.f32 %v817, %v726
  %821 = vrot.lane.b32.xlu0 %v818, 64
  %v822 = vpop.permute.xlu0 %821
  %v824 = vmul.f32 %v817, %v822
  %826 = vrot.lane.b32.xlu0 %v824, 32
  %v827 = vpop.permute.xlu0 %826
  %v829 = vadd.f32 %v819, %v827
  %v830 = vtanh.pop %v829
  %832 = vrot.lane.b32.xlu0 %v830, 64
  %v833 = vpop.permute.xlu0 %832
  %v835 = vmul.f32 %v817, %v833
  %837 = vrot.lane.b32.xlu0 %v835, 32
  %v838 = vpop.permute.xlu0 %837
  %840 = vst.msk [vmem:[%s4 + $0xc] sm:$0x3] %vm221, %v838
  %v841 = vld [vmem:[#allocation2 + $0xe] sm:$0x3]
  %v842 = vsel %vm30, %v838, 0
  %844 = vmatprep.subr.mxu0 0.0
  %845 = vmatpush1.msra.mxu0 %v114
  %846 = vmatprep.subr.mxu0 0.0
  %847 = vmatpush1.msra.mxu0 %v115
  %848 = vmatprep.subr.mxu0 0.0
  %849 = vmatpush1.msra.mxu0 %v116
  %850 = vmatprep.subr.mxu0 0.0
  %851 = vmatpush1.msra.mxu0 %v117
  %852 = vmatprep.subr.mxu0 0.0
  %853 = vmatpush1.msra.mxu0 0.0
  %854 = vmatprep.subr.mxu0 0.0
  %855 = vmatpush1.msra.mxu0 0.0
  %856 = vmatprep.subr.mxu0 0.0
  %857 = vmatpush1.msra.mxu0 0.0
  %858 = vmatprep.subr.mxu0 0.0
  %859 = vmatpush1.msra.mxu0 0.0
  %860 = vmatprep.subr.mxu0 0.0
  %861 = vmatpush1.msra.mxu0 0.0
  %862 = vmatprep.subr.mxu0 0.0
  %863 = vmatpush1.msra.mxu0 0.0
  %864 = vmatprep.subr.mxu0 0.0
  %865 = vmatpush1.msra.mxu0 0.0
  %866 = vmatprep.subr.mxu0 0.0
  %867 = vmatpush1.msra.mxu0 0.0
  %868 = vmatprep.subr.mxu0 0.0
  %869 = vmatpush1.msra.mxu0 0.0
  %870 = vmatprep.subr.mxu0 0.0
  %871 = vmatpush1.msra.mxu0 0.0
  %872 = vmatprep.subr.mxu0 0.0
  %873 = vmatpush1.msra.mxu0 0.0
  %874 = vmatprep.subr.mxu0 0.0
  %875 = vmatpush1.msra.mxu0 0.0
  %876 = vmatprep.subr.mxu0 0.0
  %877 = vmatpush1.msra.mxu0 0.0
  %878 = vmatprep.subr.mxu0 0.0
  %879 = vmatpush1.msra.mxu0 0.0
  %880 = vmatprep.subr.mxu0 0.0
  %881 = vmatpush1.msra.mxu0 0.0
  %882 = vmatprep.subr.mxu0 0.0
  %883 = vmatpush1.msra.mxu0 0.0
  %884 = vmatprep.subr.mxu0 0.0
  %885 = vmatpush1.msra.mxu0 0.0
  %886 = vmatprep.subr.mxu0 0.0
  %887 = vmatpush1.msra.mxu0 0.0
  %888 = vmatprep.subr.mxu0 0.0
  %889 = vmatpush1.msra.mxu0 0.0
  %890 = vmatprep.subr.mxu0 0.0
  %891 = vmatpush1.msra.mxu0 0.0
  %892 = vmatprep.subr.mxu0 0.0
  %893 = vmatpush1.msra.mxu0 0.0
  %894 = vmatprep.subr.mxu0 0.0
  %895 = vmatpush1.msra.mxu0 0.0
  %896 = vmatprep.subr.mxu0 0.0
  %897 = vmatpush1.msra.mxu0 0.0
  %898 = vmatprep.subr.mxu0 0.0
  %899 = vmatpush1.msra.mxu0 0.0
  %900 = vmatprep.subr.mxu0 0.0
  %901 = vmatpush1.msra.mxu0 0.0
  %902 = vmatprep.subr.mxu0 0.0
  %903 = vmatpush1.msra.mxu0 0.0
  %904 = vmatprep.subr.mxu0 0.0
  %905 = vmatpush1.msra.mxu0 0.0
  %906 = vmatprep.subr.mxu0 0.0
  %907 = vmatpush1.msra.mxu0 0.0
  %908 = vmatprep.mubr.f32.mxu0 0.0
  %909 = vmatmul.mubr.f32.gmra.mrb[0].mxu0 %v842
  %v910 = vpop.f32.mrb[0].mxu0
  %v911 = vadd.f32 0.0, %v910
  %v912 = vpop.f32.mrb[0].mxu0
  %913 = vdwg.mxu0
  %v914 = vadd.f32 %v841, %v911
  %v915 = vxor.u32 %v914, 2147483648
  %v916 = vmul.f32 %v915, 1.442695
  %v917 = vpow.pop %v916
  %v918 = vadd.f32 %v917, 1.0
  %v919 = vrcp.pop %v918
  %v920 = vmul.f32 1.0, %v919
  %v921 = vtanh.pop %v914
  %v922 = vmul.f32 %v920, %v829
  %924 = vrot.lane.b32.xlu0 %v921, 64
  %v925 = vpop.permute.xlu0 %924
  %v927 = vmul.f32 %v920, %v925
  %929 = vrot.lane.b32.xlu0 %v927, 32
  %v930 = vpop.permute.xlu0 %929
  %v932 = vadd.f32 %v922, %v930
  %v933 = vtanh.pop %v932
  %935 = vrot.lane.b32.xlu0 %v933, 64
  %v936 = vpop.permute.xlu0 %935
  %v938 = vmul.f32 %v920, %v936
  %940 = vrot.lane.b32.xlu0 %v938, 32
  %v941 = vpop.permute.xlu0 %940
  %943 = vst.msk [vmem:[%s4 + $0xe] sm:$0x3] %vm221, %v941
  %v944 = vld [vmem:[%s4] sm:$0xff]
  %v945 = vld [vmem:[%s4 + $0x8] sm:$0xff]
  %s946 = scalar_lea.vmem %s1, 32
  %v947 = vld [vmem:[%s946] sm:$0xff]
  %v948 = vld [vmem:[%s946 + $0x8] sm:$0xff]
  %v949 = vld [vmem:[%s946 + $0x10] sm:$0xff]
  %v950 = vld [vmem:[%s946 + $0x18] sm:$0xff]
  %s951 = scalar_lea.vmem %s3, 1
  %v952 = vld [vmem:[%s951] sm:$0x1]
  %v954 = vlaneseq
  %v955 = vshrl.u32 %v954, 7
  %v956 = vsub.s32 0, %v955
  %v957 = vrot.slane %v952, %v956
  %v960 = vsel %vm30, %v944, 0
  %v963 = vsel %vm30, %v945, 0
  %965 = vmatprep.subr.mxu0 0.0
  %966 = vmatpush1.msra.mxu0 %v947
  %967 = vmatprep.subr.mxu0 0.0
  %968 = vmatpush1.msra.mxu0 %v948
  %969 = vmatprep.subr.mxu0 0.0
  %970 = vmatpush1.msra.mxu0 %v949
  %971 = vmatprep.subr.mxu0 0.0
  %972 = vmatpush1.msra.mxu0 %v950
  %973 = vmatprep.subr.mxu0 0.0
  %974 = vmatpush1.msra.mxu0 0.0
  %975 = vmatprep.subr.mxu0 0.0
  %976 = vmatpush1.msra.mxu0 0.0
  %977 = vmatprep.subr.mxu0 0.0
  %978 = vmatpush1.msra.mxu0 0.0
  %979 = vmatprep.subr.mxu0 0.0
  %980 = vmatpush1.msra.mxu0 0.0
  %981 = vmatprep.subr.mxu0 0.0
  %982 = vmatpush1.msra.mxu0 0.0
  %983 = vmatprep.subr.mxu0 0.0
  %984 = vmatpush1.msra.mxu0 0.0
  %985 = vmatprep.subr.mxu0 0.0
  %986 = vmatpush1.msra.mxu0 0.0
  %987 = vmatprep.subr.mxu0 0.0
  %988 = vmatpush1.msra.mxu0 0.0
  %989 = vmatprep.subr.mxu0 0.0
  %990 = vmatpush1.msra.mxu0 0.0
  %991 = vmatprep.subr.mxu0 0.0
  %992 = vmatpush1.msra.mxu0 0.0
  %993 = vmatprep.subr.mxu0 0.0
  %994 = vmatpush1.msra.mxu0 0.0
  %995 = vmatprep.subr.mxu0 0.0
  %996 = vmatpush1.msra.mxu0 0.0
  %997 = vmatprep.subr.mxu0 0.0
  %998 = vmatpush1.msra.mxu0 0.0
  %999 = vmatprep.subr.mxu0 0.0
  %1000 = vmatpush1.msra.mxu0 0.0
  %1001 = vmatprep.subr.mxu0 0.0
  %1002 = vmatpush1.msra.mxu0 0.0
  %1003 = vmatprep.subr.mxu0 0.0
  %1004 = vmatpush1.msra.mxu0 0.0
  %1005 = vmatprep.subr.mxu0 0.0
  %1006 = vmatpush1.msra.mxu0 0.0
  %1007 = vmatprep.subr.mxu0 0.0
  %1008 = vmatpush1.msra.mxu0 0.0
  %1009 = vmatprep.subr.mxu0 0.0
  %1010 = vmatpush1.msra.mxu0 0.0
  %1011 = vmatprep.subr.mxu0 0.0
  %1012 = vmatpush1.msra.mxu0 0.0
  %1013 = vmatprep.subr.mxu0 0.0
  %1014 = vmatpush1.msra.mxu0 0.0
  %1015 = vmatprep.subr.mxu0 0.0
  %1016 = vmatpush1.msra.mxu0 0.0
  %1017 = vmatprep.subr.mxu0 0.0
  %1018 = vmatpush1.msra.mxu0 0.0
  %1019 = vmatprep.subr.mxu0 0.0
  %1020 = vmatpush1.msra.mxu0 0.0
  %1021 = vmatprep.subr.mxu0 0.0
  %1022 = vmatpush1.msra.mxu0 0.0
  %1023 = vmatprep.subr.mxu0 0.0
  %1024 = vmatpush1.msra.mxu0 0.0
  %1025 = vmatprep.subr.mxu0 0.0
  %1026 = vmatpush1.msra.mxu0 0.0
  %1027 = vmatprep.subr.mxu0 0.0
  %1028 = vmatpush1.msra.mxu0 0.0
  %1029 = vmatprep.mubr.f32.mxu0 0.0
  %1030 = vmatmul.mubr.f32.gmra.mrb[0].mxu0 %v960
  %v1031 = vpop.f32.mrb[0].mxu0
  %v1032 = vadd.f32 %v957, %v1031
  %v1033 = vpop.f32.mrb[0].mxu0
  %1034 = vmatprep.mubr.f32.mxu0 0.0
  %1035 = vmatmul.mubr.f32.gmra.mrb[0].mxu0 %v963
  %v1036 = vpop.f32.mrb[0].mxu0
  %v1037 = vadd.f32 %v957, %v1036
  %v1038 = vpop.f32.mrb[0].mxu0
  %1039 = vdwg.mxu0
  %1040 = vst [vmem:[#allocation2] sm:$0xff] %v1032
  %1041 = vst [vmem:[#allocation2 + $0x8] sm:$0xff] %v1037
  %s1042 = scalar_lea.vmem %s2, 32
  %v1043 = vld [vmem:[%s1042] sm:$0xff]
  %v1044 = vld [vmem:[%s1042 + $0x8] sm:$0xff]
  %v1045 = vld [vmem:[%s1042 + $0x10] sm:$0xff]
  %v1046 = vld [vmem:[%s1042 + $0x18] sm:$0xff]
  %v1047 = vld [vmem:[#allocation2] sm:$0x3]
  %1048 = vmatprep.subr.mxu0 0.0
  %1049 = vmatpush1.msra.mxu0 %v1043
  %1050 = vmatprep.subr.mxu0 0.0
  %1051 = vmatpush1.msra.mxu0 %v1044
  %1052 = vmatprep.subr.mxu0 0.0
  %1053 = vmatpush1.msra.mxu0 %v1045
  %1054 = vmatprep.subr.mxu0 0.0
  %1055 = vmatpush1.msra.mxu0 %v1046
  %1056 = vmatprep.subr.mxu0 0.0
  %1057 = vmatpush1.msra.mxu0 0.0
  %1058 = vmatprep.subr.mxu0 0.0
  %1059 = vmatpush1.msra.mxu0 0.0
  %1060 = vmatprep.subr.mxu0 0.0
  %1061 = vmatpush1.msra.mxu0 0.0
  %1062 = vmatprep.subr.mxu0 0.0
  %1063 = vmatpush1.msra.mxu0 0.0
  %1064 = vmatprep.subr.mxu0 0.0
  %1065 = vmatpush1.msra.mxu0 0.0
  %1066 = vmatprep.subr.mxu0 0.0
  %1067 = vmatpush1.msra.mxu0 0.0
  %1068 = vmatprep.subr.mxu0 0.0
  %1069 = vmatpush1.msra.mxu0 0.0
  %1070 = vmatprep.subr.mxu0 0.0
  %1071 = vmatpush1.msra.mxu0 0.0
  %1072 = vmatprep.subr.mxu0 0.0
  %1073 = vmatpush1.msra.mxu0 0.0
  %1074 = vmatprep.subr.mxu0 0.0
  %1075 = vmatpush1.msra.mxu0 0.0
  %1076 = vmatprep.subr.mxu0 0.0
  %1077 = vmatpush1.msra.mxu0 0.0
  %1078 = vmatprep.subr.mxu0 0.0
  %1079 = vmatpush1.msra.mxu0 0.0
  %1080 = vmatprep.subr.mxu0 0.0
  %1081 = vmatpush1.msra.mxu0 0.0
  %1082 = vmatprep.subr.mxu0 0.0
  %1083 = vmatpush1.msra.mxu0 0.0
  %1084 = vmatprep.subr.mxu0 0.0
  %1085 = vmatpush1.msra.mxu0 0.0
  %1086 = vmatprep.subr.mxu0 0.0
  %1087 = vmatpush1.msra.mxu0 0.0
  %1088 = vmatprep.subr.mxu0 0.0
  %1089 = vmatpush1.msra.mxu0 0.0
  %1090 = vmatprep.subr.mxu0 0.0
  %1091 = vmatpush1.msra.mxu0 0.0
  %1092 = vmatprep.subr.mxu0 0.0
  %1093 = vmatpush1.msra.mxu0 0.0
  %1094 = vmatprep.subr.mxu0 0.0
  %1095 = vmatpush1.msra.mxu0 0.0
  %1096 = vmatprep.subr.mxu0 0.0
  %1097 = vmatpush1.msra.mxu0 0.0
  %1098 = vmatprep.subr.mxu0 0.0
  %1099 = vmatpush1.msra.mxu0 0.0
  %1100 = vmatprep.subr.mxu0 0.0
  %1101 = vmatpush1.msra.mxu0 0.0
  %1102 = vmatprep.subr.mxu0 0.0
  %1103 = vmatpush1.msra.mxu0 0.0
  %1104 = vmatprep.subr.mxu0 0.0
  %1105 = vmatpush1.msra.mxu0 0.0
  %1106 = vmatprep.subr.mxu0 0.0
  %1107 = vmatpush1.msra.mxu0 0.0
  %1108 = vmatprep.subr.mxu0 0.0
  %1109 = vmatpush1.msra.mxu0 0.0
  %1110 = vmatprep.subr.mxu0 0.0
  %1111 = vmatpush1.msra.mxu0 0.0
  %1112 = vmatprep.mubr.f32.mxu0 0.0
  %1113 = vmatmul.mubr.f32.gmra.mrb[0].mxu0 %v120
  %v1114 = vpop.f32.mrb[0].mxu0
  %v1115 = vadd.f32 0.0, %v1114
  %v1116 = vpop.f32.mrb[0].mxu0
  %1117 = vdwg.mxu0
  %v1118 = vadd.f32 %v1047, %v1115
  %v1119 = vxor.u32 %v1118, 2147483648
  %v1120 = vmul.f32 %v1119, 1.442695
  %v1121 = vpow.pop %v1120
  %v1122 = vadd.f32 %v1121, 1.0
  %v1123 = vrcp.pop %v1122
  %v1124 = vmul.f32 1.0, %v1123
  %v1125 = vtanh.pop %v1118
  %v1126 = vmul.f32 %v1124, 0.0
  %1128 = vrot.lane.b32.xlu0 %v1125, 64
  %v1129 = vpop.permute.xlu0 %1128
  %v1131 = vmul.f32 %v1124, %v1129
  %1133 = vrot.lane.b32.xlu0 %v1131, 32
  %v1134 = vpop.permute.xlu0 %1133
  %v1136 = vadd.f32 %v1126, %v1134
  %v1137 = vtanh.pop %v1136
  %1139 = vrot.lane.b32.xlu0 %v1137, 64
  %v1140 = vpop.permute.xlu0 %1139
  %v1142 = vmul.f32 %v1124, %v1140
  %1144 = vrot.lane.b32.xlu0 %v1142, 32
  %v1145 = vpop.permute.xlu0 %1144
  %1147 = vst.msk [vmem:[%s4] sm:$0x3] %vm221, %v1145
  %v1148 = vld [vmem:[#allocation2 + $0x2] sm:$0x3]
  %v1149 = vsel %vm30, %v1145, 0
  %1151 = vmatprep.subr.mxu0 0.0
  %1152 = vmatpush1.msra.mxu0 %v1043
  %1153 = vmatprep.subr.mxu0 0.0
  %1154 = vmatpush1.msra.mxu0 %v1044
  %1155 = vmatprep.subr.mxu0 0.0
  %1156 = vmatpush1.msra.mxu0 %v1045
  %1157 = vmatprep.subr.mxu0 0.0
  %1158 = vmatpush1.msra.mxu0 %v1046
  %1159 = vmatprep.subr.mxu0 0.0
  %1160 = vmatpush1.msra.mxu0 0.0
  %1161 = vmatprep.subr.mxu0 0.0
  %1162 = vmatpush1.msra.mxu0 0.0
  %1163 = vmatprep.subr.mxu0 0.0
  %1164 = vmatpush1.msra.mxu0 0.0
  %1165 = vmatprep.subr.mxu0 0.0
  %1166 = vmatpush1.msra.mxu0 0.0
  %1167 = vmatprep.subr.mxu0 0.0
  %1168 = vmatpush1.msra.mxu0 0.0
  %1169 = vmatprep.subr.mxu0 0.0
  %1170 = vmatpush1.msra.mxu0 0.0
  %1171 = vmatprep.subr.mxu0 0.0
  %1172 = vmatpush1.msra.mxu0 0.0
  %1173 = vmatprep.subr.mxu0 0.0
  %1174 = vmatpush1.msra.mxu0 0.0
  %1175 = vmatprep.subr.mxu0 0.0
  %1176 = vmatpush1.msra.mxu0 0.0
  %1177 = vmatprep.subr.mxu0 0.0
  %1178 = vmatpush1.msra.mxu0 0.0
  %1179 = vmatprep.subr.mxu0 0.0
  %1180 = vmatpush1.msra.mxu0 0.0
  %1181 = vmatprep.subr.mxu0 0.0
  %1182 = vmatpush1.msra.mxu0 0.0
  %1183 = vmatprep.subr.mxu0 0.0
  %1184 = vmatpush1.msra.mxu0 0.0
  %1185 = vmatprep.subr.mxu0 0.0
  %1186 = vmatpush1.msra.mxu0 0.0
  %1187 = vmatprep.subr.mxu0 0.0
  %1188 = vmatpush1.msra.mxu0 0.0
  %1189 = vmatprep.subr.mxu0 0.0
  %1190 = vmatpush1.msra.mxu0 0.0
  %1191 = vmatprep.subr.mxu0 0.0
  %1192 = vmatpush1.msra.mxu0 0.0
  %1193 = vmatprep.subr.mxu0 0.0
  %1194 = vmatpush1.msra.mxu0 0.0
  %1195 = vmatprep.subr.mxu0 0.0
  %1196 = vmatpush1.msra.mxu0 0.0
  %1197 = vmatprep.subr.mxu0 0.0
  %1198 = vmatpush1.msra.mxu0 0.0
  %1199 = vmatprep.subr.mxu0 0.0
  %1200 = vmatpush1.msra.mxu0 0.0
  %1201 = vmatprep.subr.mxu0 0.0
  %1202 = vmatpush1.msra.mxu0 0.0
  %1203 = vmatprep.subr.mxu0 0.0
  %1204 = vmatpush1.msra.mxu0 0.0
  %1205 = vmatprep.subr.mxu0 0.0
  %1206 = vmatpush1.msra.mxu0 0.0
  %1207 = vmatprep.subr.mxu0 0.0
  %1208 = vmatpush1.msra.mxu0 0.0
  %1209 = vmatprep.subr.mxu0 0.0
  %1210 = vmatpush1.msra.mxu0 0.0
  %1211 = vmatprep.subr.mxu0 0.0
  %1212 = vmatpush1.msra.mxu0 0.0
  %1213 = vmatprep.subr.mxu0 0.0
  %1214 = vmatpush1.msra.mxu0 0.0
  %1215 = vmatprep.mubr.f32.mxu0 0.0
  %1216 = vmatmul.mubr.f32.gmra.mrb[0].mxu0 %v1149
  %v1217 = vpop.f32.mrb[0].mxu0
  %v1218 = vadd.f32 0.0, %v1217
  %v1219 = vpop.f32.mrb[0].mxu0
  %1220 = vdwg.mxu0
  %v1221 = vadd.f32 %v1148, %v1218
  %v1222 = vxor.u32 %v1221, 2147483648
  %v1223 = vmul.f32 %v1222, 1.442695
  %v1224 = vpow.pop %v1223
  %v1225 = vadd.f32 %v1224, 1.0
  %v1226 = vrcp.pop %v1225
  %v1227 = vmul.f32 1.0, %v1226
  %v1228 = vtanh.pop %v1221
  %v1229 = vmul.f32 %v1227, %v1136
  %1231 = vrot.lane.b32.xlu0 %v1228, 64
  %v1232 = vpop.permute.xlu0 %1231
  %v1234 = vmul.f32 %v1227, %v1232
  %1236 = vrot.lane.b32.xlu0 %v1234, 32
  %v1237 = vpop.permute.xlu0 %1236
  %v1239 = vadd.f32 %v1229, %v1237
  %v1240 = vtanh.pop %v1239
  %1242 = vrot.lane.b32.xlu0 %v1240, 64
  %v1243 = vpop.permute.xlu0 %1242
  %v1245 = vmul.f32 %v1227, %v1243
  %1247 = vrot.lane.b32.xlu0 %v1245, 32
  %v1248 = vpop.permute.xlu0 %1247
  %1250 = vst.msk [vmem:[%s4 + $0x2] sm:$0x3] %vm221, %v1248
  %v1251 = vld [vmem:[#allocation2 + $0x4] sm:$0x3]
  %v1252 = vsel %vm30, %v1248, 0
  %1254 = vmatprep.subr.mxu0 0.0
  %1255 = vmatpush1.msra.mxu0 %v1043
  %1256 = vmatprep.subr.mxu0 0.0
  %1257 = vmatpush1.msra.mxu0 %v1044
  %1258 = vmatprep.subr.mxu0 0.0
  %1259 = vmatpush1.msra.mxu0 %v1045
  %1260 = vmatprep.subr.mxu0 0.0
  %1261 = vmatpush1.msra.mxu0 %v1046
  %1262 = vmatprep.subr.mxu0 0.0
  %1263 = vmatpush1.msra.mxu0 0.0
  %1264 = vmatprep.subr.mxu0 0.0
  %1265 = vmatpush1.msra.mxu0 0.0
  %1266 = vmatprep.subr.mxu0 0.0
  %1267 = vmatpush1.msra.mxu0 0.0
  %1268 = vmatprep.subr.mxu0 0.0
  %1269 = vmatpush1.msra.mxu0 0.0
  %1270 = vmatprep.subr.mxu0 0.0
  %1271 = vmatpush1.msra.mxu0 0.0
  %1272 = vmatprep.subr.mxu0 0.0
  %1273 = vmatpush1.msra.mxu0 0.0
  %1274 = vmatprep.subr.mxu0 0.0
  %1275 = vmatpush1.msra.mxu0 0.0
  %1276 = vmatprep.subr.mxu0 0.0
  %1277 = vmatpush1.msra.mxu0 0.0
  %1278 = vmatprep.subr.mxu0 0.0
  %1279 = vmatpush1.msra.mxu0 0.0
  %1280 = vmatprep.subr.mxu0 0.0
  %1281 = vmatpush1.msra.mxu0 0.0
  %1282 = vmatprep.subr.mxu0 0.0
  %1283 = vmatpush1.msra.mxu0 0.0
  %1284 = vmatprep.subr.mxu0 0.0
  %1285 = vmatpush1.msra.mxu0 0.0
  %1286 = vmatprep.subr.mxu0 0.0
  %1287 = vmatpush1.msra.mxu0 0.0
  %1288 = vmatprep.subr.mxu0 0.0
  %1289 = vmatpush1.msra.mxu0 0.0
  %1290 = vmatprep.subr.mxu0 0.0
  %1291 = vmatpush1.msra.mxu0 0.0
  %1292 = vmatprep.subr.mxu0 0.0
  %1293 = vmatpush1.msra.mxu0 0.0
  %1294 = vmatprep.subr.mxu0 0.0
  %1295 = vmatpush1.msra.mxu0 0.0
  %1296 = vmatprep.subr.mxu0 0.0
  %1297 = vmatpush1.msra.mxu0 0.0
  %1298 = vmatprep.subr.mxu0 0.0
  %1299 = vmatpush1.msra.mxu0 0.0
  %1300 = vmatprep.subr.mxu0 0.0
  %1301 = vmatpush1.msra.mxu0 0.0
  %1302 = vmatprep.subr.mxu0 0.0
  %1303 = vmatpush1.msra.mxu0 0.0
  %1304 = vmatprep.subr.mxu0 0.0
  %1305 = vmatpush1.msra.mxu0 0.0
  %1306 = vmatprep.subr.mxu0 0.0
  %1307 = vmatpush1.msra.mxu0 0.0
  %1308 = vmatprep.subr.mxu0 0.0
  %1309 = vmatpush1.msra.mxu0 0.0
  %1310 = vmatprep.subr.mxu0 0.0
  %1311 = vmatpush1.msra.mxu0 0.0
  %1312 = vmatprep.subr.mxu0 0.0
  %1313 = vmatpush1.msra.mxu0 0.0
  %1314 = vmatprep.subr.mxu0 0.0
  %1315 = vmatpush1.msra.mxu0 0.0
  %1316 = vmatprep.subr.mxu0 0.0
  %1317 = vmatpush1.msra.mxu0 0.0
  %1318 = vmatprep.mubr.f32.mxu0 0.0
  %1319 = vmatmul.mubr.f32.gmra.mrb[0].mxu0 %v1252
  %v1320 = vpop.f32.mrb[0].mxu0
  %v1321 = vadd.f32 0.0, %v1320
  %v1322 = vpop.f32.mrb[0].mxu0
  %1323 = vdwg.mxu0
  %v1324 = vadd.f32 %v1251, %v1321
  %v1325 = vxor.u32 %v1324, 2147483648
  %v1326 = vmul.f32 %v1325, 1.442695
  %v1327 = vpow.pop %v1326
  %v1328 = vadd.f32 %v1327, 1.0
  %v1329 = vrcp.pop %v1328
  %v1330 = vmul.f32 1.0, %v1329
  %v1331 = vtanh.pop %v1324
  %v1332 = vmul.f32 %v1330, %v1239
  %1334 = vrot.lane.b32.xlu0 %v1331, 64
  %v1335 = vpop.permute.xlu0 %1334
  %v1337 = vmul.f32 %v1330, %v1335
  %1339 = vrot.lane.b32.xlu0 %v1337, 32
  %v1340 = vpop.permute.xlu0 %1339
  %v1342 = vadd.f32 %v1332, %v1340
  %v1343 = vtanh.pop %v1342
  %1345 = vrot.lane.b32.xlu0 %v1343, 64
  %v1346 = vpop.permute.xlu0 %1345
  %v1348 = vmul.f32 %v1330, %v1346
  %1350 = vrot.lane.b32.xlu0 %v1348, 32
  %v1351 = vpop.permute.xlu0 %1350
  %1353 = vst.msk [vmem:[%s4 + $0x4] sm:$0x3] %vm221, %v1351
  %v1354 = vld [vmem:[#allocation2 + $0x6] sm:$0x3]
  %v1355 = vsel %vm30, %v1351, 0
  %1357 = vmatprep.subr.mxu0 0.0
  %1358 = vmatpush1.msra.mxu0 %v1043
  %1359 = vmatprep.subr.mxu0 0.0
  %1360 = vmatpush1.msra.mxu0 %v1044
  %1361 = vmatprep.subr.mxu0 0.0
  %1362 = vmatpush1.msra.mxu0 %v1045
  %1363 = vmatprep.subr.mxu0 0.0
  %1364 = vmatpush1.msra.mxu0 %v1046
  %1365 = vmatprep.subr.mxu0 0.0
  %1366 = vmatpush1.msra.mxu0 0.0
  %1367 = vmatprep.subr.mxu0 0.0
  %1368 = vmatpush1.msra.mxu0 0.0
  %1369 = vmatprep.subr.mxu0 0.0
  %1370 = vmatpush1.msra.mxu0 0.0
  %1371 = vmatprep.subr.mxu0 0.0
  %1372 = vmatpush1.msra.mxu0 0.0
  %1373 = vmatprep.subr.mxu0 0.0
  %1374 = vmatpush1.msra.mxu0 0.0
  %1375 = vmatprep.subr.mxu0 0.0
  %1376 = vmatpush1.msra.mxu0 0.0
  %1377 = vmatprep.subr.mxu0 0.0
  %1378 = vmatpush1.msra.mxu0 0.0
  %1379 = vmatprep.subr.mxu0 0.0
  %1380 = vmatpush1.msra.mxu0 0.0
  %1381 = vmatprep.subr.mxu0 0.0
  %1382 = vmatpush1.msra.mxu0 0.0
  %1383 = vmatprep.subr.mxu0 0.0
  %1384 = vmatpush1.msra.mxu0 0.0
  %1385 = vmatprep.subr.mxu0 0.0
  %1386 = vmatpush1.msra.mxu0 0.0
  %1387 = vmatprep.subr.mxu0 0.0
  %1388 = vmatpush1.msra.mxu0 0.0
  %1389 = vmatprep.subr.mxu0 0.0
  %1390 = vmatpush1.msra.mxu0 0.0
  %1391 = vmatprep.subr.mxu0 0.0
  %1392 = vmatpush1.msra.mxu0 0.0
  %1393 = vmatprep.subr.mxu0 0.0
  %1394 = vmatpush1.msra.mxu0 0.0
  %1395 = vmatprep.subr.mxu0 0.0
  %1396 = vmatpush1.msra.mxu0 0.0
  %1397 = vmatprep.subr.mxu0 0.0
  %1398 = vmatpush1.msra.mxu0 0.0
  %1399 = vmatprep.subr.mxu0 0.0
  %1400 = vmatpush1.msra.mxu0 0.0
  %1401 = vmatprep.subr.mxu0 0.0
  %1402 = vmatpush1.msra.mxu0 0.0
  %1403 = vmatprep.subr.mxu0 0.0
  %1404 = vmatpush1.msra.mxu0 0.0
  %1405 = vmatprep.subr.mxu0 0.0
  %1406 = vmatpush1.msra.mxu0 0.0
  %1407 = vmatprep.subr.mxu0 0.0
  %1408 = vmatpush1.msra.mxu0 0.0
  %1409 = vmatprep.subr.mxu0 0.0
  %1410 = vmatpush1.msra.mxu0 0.0
  %1411 = vmatprep.subr.mxu0 0.0
  %1412 = vmatpush1.msra.mxu0 0.0
  %1413 = vmatprep.subr.mxu0 0.0
  %1414 = vmatpush1.msra.mxu0 0.0
  %1415 = vmatprep.subr.mxu0 0.0
  %1416 = vmatpush1.msra.mxu0 0.0
  %1417 = vmatprep.subr.mxu0 0.0
  %1418 = vmatpush1.msra.mxu0 0.0
  %1419 = vmatprep.subr.mxu0 0.0
  %1420 = vmatpush1.msra.mxu0 0.0
  %1421 = vmatprep.mubr.f32.mxu0 0.0
  %1422 = vmatmul.mubr.f32.gmra.mrb[0].mxu0 %v1355
  %v1423 = vpop.f32.mrb[0].mxu0
  %v1424 = vadd.f32 0.0, %v1423
  %v1425 = vpop.f32.mrb[0].mxu0
  %1426 = vdwg.mxu0
  %v1427 = vadd.f32 %v1354, %v1424
  %v1428 = vxor.u32 %v1427, 2147483648
  %v1429 = vmul.f32 %v1428, 1.442695
  %v1430 = vpow.pop %v1429
  %v1431 = vadd.f32 %v1430, 1.0
  %v1432 = vrcp.pop %v1431
  %v1433 = vmul.f32 1.0, %v1432
  %v1434 = vtanh.pop %v1427
  %v1435 = vmul.f32 %v1433, %v1342
  %1437 = vrot.lane.b32.xlu0 %v1434, 64
  %v1438 = vpop.permute.xlu0 %1437
  %v1440 = vmul.f32 %v1433, %v1438
  %1442 = vrot.lane.b32.xlu0 %v1440, 32
  %v1443 = vpop.permute.xlu0 %1442
  %v1445 = vadd.f32 %v1435, %v1443
  %v1446 = vtanh.pop %v1445
  %1448 = vrot.lane.b32.xlu0 %v1446, 64
  %v1449 = vpop.permute.xlu0 %1448
  %v1451 = vmul.f32 %v1433, %v1449
  %1453 = vrot.lane.b32.xlu0 %v1451, 32
  %v1454 = vpop.permute.xlu0 %1453
  %1456 = vst.msk [vmem:[%s4 + $0x6] sm:$0x3] %vm221, %v1454
  %v1457 = vld [vmem:[#allocation2 + $0x8] sm:$0x3]
  %v1458 = vsel %vm30, %v1454, 0
  %1460 = vmatprep.subr.mxu0 0.0
  %1461 = vmatpush1.msra.mxu0 %v1043
  %1462 = vmatprep.subr.mxu0 0.0
  %1463 = vmatpush1.msra.mxu0 %v1044
  %1464 = vmatprep.subr.mxu0 0.0
  %1465 = vmatpush1.msra.mxu0 %v1045
  %1466 = vmatprep.subr.mxu0 0.0
  %1467 = vmatpush1.msra.mxu0 %v1046
  %1468 = vmatprep.subr.mxu0 0.0
  %1469 = vmatpush1.msra.mxu0 0.0
  %1470 = vmatprep.subr.mxu0 0.0
  %1471 = vmatpush1.msra.mxu0 0.0
  %1472 = vmatprep.subr.mxu0 0.0
  %1473 = vmatpush1.msra.mxu0 0.0
  %1474 = vmatprep.subr.mxu0 0.0
  %1475 = vmatpush1.msra.mxu0 0.0
  %1476 = vmatprep.subr.mxu0 0.0
  %1477 = vmatpush1.msra.mxu0 0.0
  %1478 = vmatprep.subr.mxu0 0.0
  %1479 = vmatpush1.msra.mxu0 0.0
  %1480 = vmatprep.subr.mxu0 0.0
  %1481 = vmatpush1.msra.mxu0 0.0
  %1482 = vmatprep.subr.mxu0 0.0
  %1483 = vmatpush1.msra.mxu0 0.0
  %1484 = vmatprep.subr.mxu0 0.0
  %1485 = vmatpush1.msra.mxu0 0.0
  %1486 = vmatprep.subr.mxu0 0.0
  %1487 = vmatpush1.msra.mxu0 0.0
  %1488 = vmatprep.subr.mxu0 0.0
  %1489 = vmatpush1.msra.mxu0 0.0
  %1490 = vmatprep.subr.mxu0 0.0
  %1491 = vmatpush1.msra.mxu0 0.0
  %1492 = vmatprep.subr.mxu0 0.0
  %1493 = vmatpush1.msra.mxu0 0.0
  %1494 = vmatprep.subr.mxu0 0.0
  %1495 = vmatpush1.msra.mxu0 0.0
  %1496 = vmatprep.subr.mxu0 0.0
  %1497 = vmatpush1.msra.mxu0 0.0
  %1498 = vmatprep.subr.mxu0 0.0
  %1499 = vmatpush1.msra.mxu0 0.0
  %1500 = vmatprep.subr.mxu0 0.0
  %1501 = vmatpush1.msra.mxu0 0.0
  %1502 = vmatprep.subr.mxu0 0.0
  %1503 = vmatpush1.msra.mxu0 0.0
  %1504 = vmatprep.subr.mxu0 0.0
  %1505 = vmatpush1.msra.mxu0 0.0
  %1506 = vmatprep.subr.mxu0 0.0
  %1507 = vmatpush1.msra.mxu0 0.0
  %1508 = vmatprep.subr.mxu0 0.0
  %1509 = vmatpush1.msra.mxu0 0.0
  %1510 = vmatprep.subr.mxu0 0.0
  %1511 = vmatpush1.msra.mxu0 0.0
  %1512 = vmatprep.subr.mxu0 0.0
  %1513 = vmatpush1.msra.mxu0 0.0
  %1514 = vmatprep.subr.mxu0 0.0
  %1515 = vmatpush1.msra.mxu0 0.0
  %1516 = vmatprep.subr.mxu0 0.0
  %1517 = vmatpush1.msra.mxu0 0.0
  %1518 = vmatprep.subr.mxu0 0.0
  %1519 = vmatpush1.msra.mxu0 0.0
  %1520 = vmatprep.subr.mxu0 0.0
  %1521 = vmatpush1.msra.mxu0 0.0
  %1522 = vmatprep.subr.mxu0 0.0
  %1523 = vmatpush1.msra.mxu0 0.0
  %1524 = vmatprep.mubr.f32.mxu0 0.0
  %1525 = vmatmul.mubr.f32.gmra.mrb[0].mxu0 %v1458
  %v1526 = vpop.f32.mrb[0].mxu0
  %v1527 = vadd.f32 0.0, %v1526
  %v1528 = vpop.f32.mrb[0].mxu0
  %1529 = vdwg.mxu0
  %v1530 = vadd.f32 %v1457, %v1527
  %v1531 = vxor.u32 %v1530, 2147483648
  %v1532 = vmul.f32 %v1531, 1.442695
  %v1533 = vpow.pop %v1532
  %v1534 = vadd.f32 %v1533, 1.0
  %v1535 = vrcp.pop %v1534
  %v1536 = vmul.f32 1.0, %v1535
  %v1537 = vtanh.pop %v1530
  %v1538 = vmul.f32 %v1536, %v1445
  %1540 = vrot.lane.b32.xlu0 %v1537, 64
  %v1541 = vpop.permute.xlu0 %1540
  %v1543 = vmul.f32 %v1536, %v1541
  %1545 = vrot.lane.b32.xlu0 %v1543, 32
  %v1546 = vpop.permute.xlu0 %1545
  %v1548 = vadd.f32 %v1538, %v1546
  %v1549 = vtanh.pop %v1548
  %1551 = vrot.lane.b32.xlu0 %v1549, 64
  %v1552 = vpop.permute.xlu0 %1551
  %v1554 = vmul.f32 %v1536, %v1552
  %1556 = vrot.lane.b32.xlu0 %v1554, 32
  %v1557 = vpop.permute.xlu0 %1556
  %1559 = vst.msk [vmem:[%s4 + $0x8] sm:$0x3] %vm221, %v1557
  %v1560 = vld [vmem:[#allocation2 + $0xa] sm:$0x3]
  %v1561 = vsel %vm30, %v1557, 0
  %1563 = vmatprep.subr.mxu0 0.0
  %1564 = vmatpush1.msra.mxu0 %v1043
  %1565 = vmatprep.subr.mxu0 0.0
  %1566 = vmatpush1.msra.mxu0 %v1044
  %1567 = vmatprep.subr.mxu0 0.0
  %1568 = vmatpush1.msra.mxu0 %v1045
  %1569 = vmatprep.subr.mxu0 0.0
  %1570 = vmatpush1.msra.mxu0 %v1046
  %1571 = vmatprep.subr.mxu0 0.0
  %1572 = vmatpush1.msra.mxu0 0.0
  %1573 = vmatprep.subr.mxu0 0.0
  %1574 = vmatpush1.msra.mxu0 0.0
  %1575 = vmatprep.subr.mxu0 0.0
  %1576 = vmatpush1.msra.mxu0 0.0
  %1577 = vmatprep.subr.mxu0 0.0
  %1578 = vmatpush1.msra.mxu0 0.0
  %1579 = vmatprep.subr.mxu0 0.0
  %1580 = vmatpush1.msra.mxu0 0.0
  %1581 = vmatprep.subr.mxu0 0.0
  %1582 = vmatpush1.msra.mxu0 0.0
  %1583 = vmatprep.subr.mxu0 0.0
  %1584 = vmatpush1.msra.mxu0 0.0
  %1585 = vmatprep.subr.mxu0 0.0
  %1586 = vmatpush1.msra.mxu0 0.0
  %1587 = vmatprep.subr.mxu0 0.0
  %1588 = vmatpush1.msra.mxu0 0.0
  %1589 = vmatprep.subr.mxu0 0.0
  %1590 = vmatpush1.msra.mxu0 0.0
  %1591 = vmatprep.subr.mxu0 0.0
  %1592 = vmatpush1.msra.mxu0 0.0
  %1593 = vmatprep.subr.mxu0 0.0
  %1594 = vmatpush1.msra.mxu0 0.0
  %1595 = vmatprep.subr.mxu0 0.0
  %1596 = vmatpush1.msra.mxu0 0.0
  %1597 = vmatprep.subr.mxu0 0.0
  %1598 = vmatpush1.msra.mxu0 0.0
  %1599 = vmatprep.subr.mxu0 0.0
  %1600 = vmatpush1.msra.mxu0 0.0
  %1601 = vmatprep.subr.mxu0 0.0
  %1602 = vmatpush1.msra.mxu0 0.0
  %1603 = vmatprep.subr.mxu0 0.0
  %1604 = vmatpush1.msra.mxu0 0.0
  %1605 = vmatprep.subr.mxu0 0.0
  %1606 = vmatpush1.msra.mxu0 0.0
  %1607 = vmatprep.subr.mxu0 0.0
  %1608 = vmatpush1.msra.mxu0 0.0
  %1609 = vmatprep.subr.mxu0 0.0
  %1610 = vmatpush1.msra.mxu0 0.0
  %1611 = vmatprep.subr.mxu0 0.0
  %1612 = vmatpush1.msra.mxu0 0.0
  %1613 = vmatprep.subr.mxu0 0.0
  %1614 = vmatpush1.msra.mxu0 0.0
  %1615 = vmatprep.subr.mxu0 0.0
  %1616 = vmatpush1.msra.mxu0 0.0
  %1617 = vmatprep.subr.mxu0 0.0
  %1618 = vmatpush1.msra.mxu0 0.0
  %1619 = vmatprep.subr.mxu0 0.0
  %1620 = vmatpush1.msra.mxu0 0.0
  %1621 = vmatprep.subr.mxu0 0.0
  %1622 = vmatpush1.msra.mxu0 0.0
  %1623 = vmatprep.subr.mxu0 0.0
  %1624 = vmatpush1.msra.mxu0 0.0
  %1625 = vmatprep.subr.mxu0 0.0
  %1626 = vmatpush1.msra.mxu0 0.0
  %1627 = vmatprep.mubr.f32.mxu0 0.0
  %1628 = vmatmul.mubr.f32.gmra.mrb[0].mxu0 %v1561
  %v1629 = vpop.f32.mrb[0].mxu0
  %v1630 = vadd.f32 0.0, %v1629
  %v1631 = vpop.f32.mrb[0].mxu0
  %1632 = vdwg.mxu0
  %v1633 = vadd.f32 %v1560, %v1630
  %v1634 = vxor.u32 %v1633, 2147483648
  %v1635 = vmul.f32 %v1634, 1.442695
  %v1636 = vpow.pop %v1635
  %v1637 = vadd.f32 %v1636, 1.0
  %v1638 = vrcp.pop %v1637
  %v1639 = vmul.f32 1.0, %v1638
  %v1640 = vtanh.pop %v1633
  %v1641 = vmul.f32 %v1639, %v1548
  %1643 = vrot.lane.b32.xlu0 %v1640, 64
  %v1644 = vpop.permute.xlu0 %1643
  %v1646 = vmul.f32 %v1639, %v1644
  %1648 = vrot.lane.b32.xlu0 %v1646, 32
  %v1649 = vpop.permute.xlu0 %1648
  %v1651 = vadd.f32 %v1641, %v1649
  %v1652 = vtanh.pop %v1651
  %1654 = vrot.lane.b32.xlu0 %v1652, 64
  %v1655 = vpop.permute.xlu0 %1654
  %v1657 = vmul.f32 %v1639, %v1655
  %1659 = vrot.lane.b32.xlu0 %v1657, 32
  %v1660 = vpop.permute.xlu0 %1659
  %1662 = vst.msk [vmem:[%s4 + $0xa] sm:$0x3] %vm221, %v1660
  %v1663 = vld [vmem:[#allocation2 + $0xc] sm:$0x3]
  %v1664 = vsel %vm30, %v1660, 0
  %1666 = vmatprep.subr.mxu0 0.0
  %1667 = vmatpush1.msra.mxu0 %v1043
  %1668 = vmatprep.subr.mxu0 0.0
  %1669 = vmatpush1.msra.mxu0 %v1044
  %1670 = vmatprep.subr.mxu0 0.0
  %1671 = vmatpush1.msra.mxu0 %v1045
  %1672 = vmatprep.subr.mxu0 0.0
  %1673 = vmatpush1.msra.mxu0 %v1046
  %1674 = vmatprep.subr.mxu0 0.0
  %1675 = vmatpush1.msra.mxu0 0.0
  %1676 = vmatprep.subr.mxu0 0.0
  %1677 = vmatpush1.msra.mxu0 0.0
  %1678 = vmatprep.subr.mxu0 0.0
  %1679 = vmatpush1.msra.mxu0 0.0
  %1680 = vmatprep.subr.mxu0 0.0
  %1681 = vmatpush1.msra.mxu0 0.0
  %1682 = vmatprep.subr.mxu0 0.0
  %1683 = vmatpush1.msra.mxu0 0.0
  %1684 = vmatprep.subr.mxu0 0.0
  %1685 = vmatpush1.msra.mxu0 0.0
  %1686 = vmatprep.subr.mxu0 0.0
  %1687 = vmatpush1.msra.mxu0 0.0
  %1688 = vmatprep.subr.mxu0 0.0
  %1689 = vmatpush1.msra.mxu0 0.0
  %1690 = vmatprep.subr.mxu0 0.0
  %1691 = vmatpush1.msra.mxu0 0.0
  %1692 = vmatprep.subr.mxu0 0.0
  %1693 = vmatpush1.msra.mxu0 0.0
  %1694 = vmatprep.subr.mxu0 0.0
  %1695 = vmatpush1.msra.mxu0 0.0
  %1696 = vmatprep.subr.mxu0 0.0
  %1697 = vmatpush1.msra.mxu0 0.0
  %1698 = vmatprep.subr.mxu0 0.0
  %1699 = vmatpush1.msra.mxu0 0.0
  %1700 = vmatprep.subr.mxu0 0.0
  %1701 = vmatpush1.msra.mxu0 0.0
  %1702 = vmatprep.subr.mxu0 0.0
  %1703 = vmatpush1.msra.mxu0 0.0
  %1704 = vmatprep.subr.mxu0 0.0
  %1705 = vmatpush1.msra.mxu0 0.0
  %1706 = vmatprep.subr.mxu0 0.0
  %1707 = vmatpush1.msra.mxu0 0.0
  %1708 = vmatprep.subr.mxu0 0.0
  %1709 = vmatpush1.msra.mxu0 0.0
  %1710 = vmatprep.subr.mxu0 0.0
  %1711 = vmatpush1.msra.mxu0 0.0
  %1712 = vmatprep.subr.mxu0 0.0
  %1713 = vmatpush1.msra.mxu0 0.0
  %1714 = vmatprep.subr.mxu0 0.0
  %1715 = vmatpush1.msra.mxu0 0.0
  %1716 = vmatprep.subr.mxu0 0.0
  %1717 = vmatpush1.msra.mxu0 0.0
  %1718 = vmatprep.subr.mxu0 0.0
  %1719 = vmatpush1.msra.mxu0 0.0
  %1720 = vmatprep.subr.mxu0 0.0
  %1721 = vmatpush1.msra.mxu0 0.0
  %1722 = vmatprep.subr.mxu0 0.0
  %1723 = vmatpush1.msra.mxu0 0.0
  %1724 = vmatprep.subr.mxu0 0.0
  %1725 = vmatpush1.msra.mxu0 0.0
  %1726 = vmatprep.subr.mxu0 0.0
  %1727 = vmatpush1.msra.mxu0 0.0
  %1728 = vmatprep.subr.mxu0 0.0
  %1729 = vmatpush1.msra.mxu0 0.0
  %1730 = vmatprep.mubr.f32.mxu0 0.0
  %1731 = vmatmul.mubr.f32.gmra.mrb[0].mxu0 %v1664
  %v1732 = vpop.f32.mrb[0].mxu0
  %v1733 = vadd.f32 0.0, %v1732
  %v1734 = vpop.f32.mrb[0].mxu0
  %1735 = vdwg.mxu0
  %v1736 = vadd.f32 %v1663, %v1733
  %v1737 = vxor.u32 %v1736, 2147483648
  %v1738 = vmul.f32 %v1737, 1.442695
  %v1739 = vpow.pop %v1738
  %v1740 = vadd.f32 %v1739, 1.0
  %v1741 = vrcp.pop %v1740
  %v1742 = vmul.f32 1.0, %v1741
  %v1743 = vtanh.pop %v1736
  %v1744 = vmul.f32 %v1742, %v1651
  %1746 = vrot.lane.b32.xlu0 %v1743, 64
  %v1747 = vpop.permute.xlu0 %1746
  %v1749 = vmul.f32 %v1742, %v1747
  %1751 = vrot.lane.b32.xlu0 %v1749, 32
  %v1752 = vpop.permute.xlu0 %1751
  %v1754 = vadd.f32 %v1744, %v1752
  %v1755 = vtanh.pop %v1754
  %1757 = vrot.lane.b32.xlu0 %v1755, 64
  %v1758 = vpop.permute.xlu0 %1757
  %v1760 = vmul.f32 %v1742, %v1758
  %1762 = vrot.lane.b32.xlu0 %v1760, 32
  %v1763 = vpop.permute.xlu0 %1762
  %1765 = vst.msk [vmem:[%s4 + $0xc] sm:$0x3] %vm221, %v1763
  %v1766 = vld [vmem:[#allocation2 + $0xe] sm:$0x3]
  %v1767 = vsel %vm30, %v1763, 0
  %1769 = vmatprep.subr.mxu0 0.0
  %1770 = vmatpush1.msra.mxu0 %v1043
  %1771 = vmatprep.subr.mxu0 0.0
  %1772 = vmatpush1.msra.mxu0 %v1044
  %1773 = vmatprep.subr.mxu0 0.0
  %1774 = vmatpush1.msra.mxu0 %v1045
  %1775 = vmatprep.subr.mxu0 0.0
  %1776 = vmatpush1.msra.mxu0 %v1046
  %1777 = vmatprep.subr.mxu0 0.0
  %1778 = vmatpush1.msra.mxu0 0.0
  %1779 = vmatprep.subr.mxu0 0.0
  %1780 = vmatpush1.msra.mxu0 0.0
  %1781 = vmatprep.subr.mxu0 0.0
  %1782 = vmatpush1.msra.mxu0 0.0
  %1783 = vmatprep.subr.mxu0 0.0
  %1784 = vmatpush1.msra.mxu0 0.0
  %1785 = vmatprep.subr.mxu0 0.0
  %1786 = vmatpush1.msra.mxu0 0.0
  %1787 = vmatprep.subr.mxu0 0.0
  %1788 = vmatpush1.msra.mxu0 0.0
  %1789 = vmatprep.subr.mxu0 0.0
  %1790 = vmatpush1.msra.mxu0 0.0
  %1791 = vmatprep.subr.mxu0 0.0
  %1792 = vmatpush1.msra.mxu0 0.0
  %1793 = vmatprep.subr.mxu0 0.0
  %1794 = vmatpush1.msra.mxu0 0.0
  %1795 = vmatprep.subr.mxu0 0.0
  %1796 = vmatpush1.msra.mxu0 0.0
  %1797 = vmatprep.subr.mxu0 0.0
  %1798 = vmatpush1.msra.mxu0 0.0
  %1799 = vmatprep.subr.mxu0 0.0
  %1800 = vmatpush1.msra.mxu0 0.0
  %1801 = vmatprep.subr.mxu0 0.0
  %1802 = vmatpush1.msra.mxu0 0.0
  %1803 = vmatprep.subr.mxu0 0.0
  %1804 = vmatpush1.msra.mxu0 0.0
  %1805 = vmatprep.subr.mxu0 0.0
  %1806 = vmatpush1.msra.mxu0 0.0
  %1807 = vmatprep.subr.mxu0 0.0
  %1808 = vmatpush1.msra.mxu0 0.0
  %1809 = vmatprep.subr.mxu0 0.0
  %1810 = vmatpush1.msra.mxu0 0.0
  %1811 = vmatprep.subr.mxu0 0.0
  %1812 = vmatpush1.msra.mxu0 0.0
  %1813 = vmatprep.subr.mxu0 0.0
  %1814 = vmatpush1.msra.mxu0 0.0
  %1815 = vmatprep.subr.mxu0 0.0
  %1816 = vmatpush1.msra.mxu0 0.0
  %1817 = vmatprep.subr.mxu0 0.0
  %1818 = vmatpush1.msra.mxu0 0.0
  %1819 = vmatprep.subr.mxu0 0.0
  %1820 = vmatpush1.msra.mxu0 0.0
  %1821 = vmatprep.subr.mxu0 0.0
  %1822 = vmatpush1.msra.mxu0 0.0
  %1823 = vmatprep.subr.mxu0 0.0
  %1824 = vmatpush1.msra.mxu0 0.0
  %1825 = vmatprep.subr.mxu0 0.0
  %1826 = vmatpush1.msra.mxu0 0.0
  %1827 = vmatprep.subr.mxu0 0.0
  %1828 = vmatpush1.msra.mxu0 0.0
  %1829 = vmatprep.subr.mxu0 0.0
  %1830 = vmatpush1.msra.mxu0 0.0
  %1831 = vmatprep.subr.mxu0 0.0
  %1832 = vmatpush1.msra.mxu0 0.0
  %1833 = vmatprep.mubr.f32.mxu0 0.0
  %1834 = vmatmul.mubr.f32.gmra.mrb[0].mxu0 %v1767
  %v1835 = vpop.f32.mrb[0].mxu0
  %v1836 = vadd.f32 0.0, %v1835
  %v1837 = vpop.f32.mrb[0].mxu0
  %1838 = vdwg.mxu0
  %v1839 = vadd.f32 %v1766, %v1836
  %v1840 = vxor.u32 %v1839, 2147483648
  %v1841 = vmul.f32 %v1840, 1.442695
  %v1842 = vpow.pop %v1841
  %v1843 = vadd.f32 %v1842, 1.0
  %v1844 = vrcp.pop %v1843
  %v1845 = vmul.f32 1.0, %v1844
  %v1846 = vtanh.pop %v1839
  %v1847 = vmul.f32 %v1845, %v1754
  %1849 = vrot.lane.b32.xlu0 %v1846, 64
  %v1850 = vpop.permute.xlu0 %1849
  %v1852 = vmul.f32 %v1845, %v1850
  %1854 = vrot.lane.b32.xlu0 %v1852, 32
  %v1855 = vpop.permute.xlu0 %1854
  %v1857 = vadd.f32 %v1847, %v1855
  %v1858 = vtanh.pop %v1857
  %1860 = vrot.lane.b32.xlu0 %v1858, 64
  %v1861 = vpop.permute.xlu0 %1860
  %v1863 = vmul.f32 %v1845, %v1861
  %1865 = vrot.lane.b32.xlu0 %v1863, 32
  %v1866 = vpop.permute.xlu0 %1865
  %1868 = vst.msk [vmem:[%s4 + $0xe] sm:$0x3] %vm221, %v1866
  // Predicated region
  $region18: #{lstm_forward.1} parent=0 // pred_check
    _
  $region19: #{lstm_forward.1} parent=0 // pred_check_branch
    %1870 = sbr.rel (0) target = $region21
  $region20: #{lstm_forward.1} parent=0 // pred_region
    _
  $region21: #{lstm_forward.1} parent=0 // pred_fallthru
    _
  // Predicated region
  $region22: #{lstm_forward.1} parent=0 // pred_check
    _
  $region23: #{lstm_forward.1} parent=0 // pred_check_branch
    %1872 = sbr.rel (0) target = $region25
  $region24: #{lstm_forward.1} parent=0 // pred_region
    _
  $region25: #{lstm_forward.1} parent=0 // pred_fallthru
    _

</llo_original>
